<compile_context>
chip_gen: v7x
topology: tpu7x:2x2x1
jax: 0.10.0
libtpu: 0.0.40
codegen_flags: <defaults>
</compile_context>

<pallas_src>
import jax
import jax.numpy as jnp
from jax import lax
from jax.experimental import pallas as pl
from jax.experimental.pallas import tpu as pltpu


def basic_block_kernel(x_ref, t1_ref, s1_ref, b1_ref, t2_ref, s2_ref, b2_ref,
                       out_ref, pad_ref):
    """B_blk images per grid step, packed along the matmul M dimension.

    x_ref   : (B, H, W*C)  f32   input images (also the residual)
    t1_ref  : (3, W*C, W*C) bf16 conv1 row-band block-Toeplitz matrices
    s1/b1   : (1, W*C)     f32   folded BN1 scale / bias (tiled over W)
    t2_ref  : (3, W*C, W*C) bf16 conv2 weights
    s2/b2   : (1, W*C)     f32
    out_ref : (B, H, W*C)  f32
    pad_ref : (B*Hp, W*C)  bf16  packed scratch; image b data at rows
                                 [b*Hp+1, b*Hp+1+H), zero halo rows around it.
    """
    B, H, WC = out_ref.shape
    M = pad_ref.shape[0]
    Hp = M // B                       # rows reserved per image (multiple of 8)

    # Establish the per-image zero halo rows with one dense full-scratch store
    # (cheap: the whole bf16 scratch is only a few dozen vregs).  Data rows are
    # overwritten immediately below, halo rows stay zero for both convs.
    pad_ref[...] = jnp.zeros_like(pad_ref)

    # Pack the images into the scratch (single bf16 cast, dense 128-lane stores).
    for b in range(B):
        pad_ref[b * Hp + 1:b * Hp + 1 + H, :] = x_ref[b].astype(jnp.bfloat16)

    def conv3x3(t_ref):
        # Three row-band matmuls on the MXU over all packed rows at once:
        #   acc[i] = sum_kh pad[i + kh] @ T[kh]
        # Valid output row h of image b sits at acc[b*Hp + h] (aligned offsets).
        acc = jnp.dot(pad_ref[0:M - 2, :], t_ref[0],
                      preferred_element_type=jnp.float32)
        acc += jnp.dot(pad_ref[1:M - 1, :], t_ref[1],
                       preferred_element_type=jnp.float32)
        acc += jnp.dot(pad_ref[2:M, :], t_ref[2],
                       preferred_element_type=jnp.float32)
        return acc                                   # (M-2, W*C) f32

    # ---- conv1 + folded bn1 + relu (epilogue batched over all rows; garbage
    #      rows between images are computed but never stored) ----
    h1 = jnp.maximum(conv3x3(t1_ref) * s1_ref[...] + b1_ref[...], 0.0)
    for b in range(B):
        pad_ref[b * Hp + 1:b * Hp + 1 + H, :] = (
            h1[b * Hp:b * Hp + H, :].astype(jnp.bfloat16))

    # ---- conv2 + folded bn2 + residual add + relu ----
    y = conv3x3(t2_ref) * s2_ref[...] + b2_ref[...]
    for b in range(B):
        out_ref[b] = jnp.maximum(y[b * Hp:b * Hp + H, :] + x_ref[b], 0.0)


def _toeplitz_bands(w_hwio, W):
    """(3, 3, Cin, Cout) HWIO -> (3, W*Cin, W*Cout) band matrices.

    The horizontal zero-padding is folded into the band's zero structure:
      T[kh, wb*Cin + ci, w*Cout + co] = w[kh, wb - w + 1, ci, co]
                                        if 0 <= wb - w + 1 < 3 else 0
    so  conv_out[h, :] = sum_kh row[h + kh - 1, :] @ T[kh],
    with zero rows supplying the vertical padding (no halo columns needed).
    """
    KH, KW, Cin, Cout = w_hwio.shape
    wb = jnp.arange(W)[:, None]          # source pixel
    w = jnp.arange(W)[None, :]           # output pixel
    kw = wb - w + 1                      # tap index
    mask = ((kw >= 0) & (kw < KW)).astype(w_hwio.dtype)
    kw_idx = jnp.clip(kw, 0, KW - 1)
    band = w_hwio[:, kw_idx, :, :]                     # (KH, W, W, Cin, Cout)
    band = band * mask[None, :, :, None, None]
    band = jnp.transpose(band, (0, 1, 3, 2, 4))        # (KH, W, Cin, W, Cout)
    return band.reshape(KH, W * Cin, W * Cout)


def _pick_images_per_step(N, cap=8):
    """Largest divisor of N <= cap, preferring >=4 grid steps (v7x: 2 per TC)."""
    divs = [d for d in range(1, N + 1) if N % d == 0 and d <= cap]
    pref = [d for d in divs if N // d >= 4]
    return max(pref) if pref else max(divs)


def basic_block_pallas(x_nhwc, w1_hwio, s1, b1, w2_hwio, s2, b2,
                       images_per_step=None):
    """x_nhwc: (N, H, W, Cin) f32; weights HWIO (3,3,Cin,Cout). Returns (N,H,W,Cout)."""
    N, H, W, Cin = x_nhwc.shape
    KH, KW, Cin2, Cout = w1_hwio.shape
    assert (KH, KW) == (3, 3) and Cin2 == Cin
    # Residual add without a downsample branch requires matching channel counts.
    assert Cin == Cout, "BasicBlock w/o downsample needs inplanes == planes"

    WC = W * Cout
    if images_per_step is None:
        images_per_step = _pick_images_per_step(N)
    B_blk = images_per_step
    assert N % B_blk == 0

    Hp = ((H + 2 + 7) // 8) * 8          # per-image rows in the packed scratch
    M = B_blk * Hp

    # Free, layout-preserving fold of (W, C) onto the lane axis (W*C = 128 here).
    x_folded = x_nhwc.reshape(N, H, WC).astype(jnp.float32)

    # Weights -> bf16 band matrices (built once, outside the kernel).
    t1 = _toeplitz_bands(w1_hwio.astype(jnp.bfloat16), W)    # (3, WC, WC)
    t2 = _toeplitz_bands(w2_hwio.astype(jnp.bfloat16), W)

    # Folded BN scale/bias tiled over W so they broadcast over (rows, W*C).
    s1_row = jnp.tile(s1.astype(jnp.float32), W).reshape(1, WC)
    b1_row = jnp.tile(b1.astype(jnp.float32), W).reshape(1, WC)
    s2_row = jnp.tile(s2.astype(jnp.float32), W).reshape(1, WC)
    b2_row = jnp.tile(b2.astype(jnp.float32), W).reshape(1, WC)

    out = pl.pallas_call(
        basic_block_kernel,
        out_shape=jax.ShapeDtypeStruct((N, H, WC), jnp.float32),
        grid_spec=pltpu.PrefetchScalarGridSpec(
            num_scalar_prefetch=0,
            grid=(N // B_blk,),
            in_specs=[
                pl.BlockSpec((B_blk, H, WC), lambda n: (n, 0, 0)),
                pl.BlockSpec((3, WC, WC), lambda n: (0, 0, 0)),
                pl.BlockSpec((1, WC), lambda n: (0, 0)),
                pl.BlockSpec((1, WC), lambda n: (0, 0)),
                pl.BlockSpec((3, WC, WC), lambda n: (0, 0, 0)),
                pl.BlockSpec((1, WC), lambda n: (0, 0)),
                pl.BlockSpec((1, WC), lambda n: (0, 0)),
            ],
            out_specs=pl.BlockSpec((B_blk, H, WC), lambda n: (n, 0, 0)),
            scratch_shapes=[pltpu.VMEM((M, WC), jnp.bfloat16)],
        ),
        compiler_params=pltpu.CompilerParams(
            dimension_semantics=("parallel",)),      # image groups are independent
    )(x_folded, t1, s1_row, b1_row, t2, s2_row, b2_row)

    return out.reshape(N, H, W, Cout)


def reference_jax(x_nhwc, w1, s1, b1, w2, s2, b2):
    """Pure-JAX reference with the same bf16-input / f32-accumulate convolutions."""
    dn = ('NHWC', 'HWIO', 'NHWC')
    y = lax.conv_general_dilated(
        x_nhwc.astype(jnp.bfloat16), w1.astype(jnp.bfloat16), (1, 1),
        ((1, 1), (1, 1)), dimension_numbers=dn,
        preferred_element_type=jnp.float32)
    y = jnp.maximum(y * s1 + b1, 0.0)
    y2 = lax.conv_general_dilated(
        y.astype(jnp.bfloat16), w2.astype(jnp.bfloat16), (1, 1),
        ((1, 1), (1, 1)), dimension_numbers=dn,
        preferred_element_type=jnp.float32)
    y2 = y2 * s2 + b2 + x_nhwc
    return jnp.maximum(y2, 0.0)


def fold_bn(gamma, beta, running_mean, running_var, eps=1e-5):
    scale = gamma / jnp.sqrt(running_var + eps)
    bias = beta - running_mean * scale
    return scale, bias


if __name__ == "__main__":
    key = jax.random.PRNGKey(0)
    N, C, H, W = 32, 8, 16, 16            # inplanes = planes = 8, stride = 1
    inplanes = planes = C

    k_x, k_w1, k_w2 = jax.random.split(key, 3)

    # PyTorch-style input (NCHW) and weights (OIHW), deterministic.
    x_nchw = jax.random.normal(k_x, (N, C, H, W), dtype=jnp.float32)
    w1_oihw = jax.random.normal(k_w1, (planes, inplanes, 3, 3),
                                dtype=jnp.float32) * 0.1
    w2_oihw = jax.random.normal(k_w2, (planes, planes, 3, 3),
                                dtype=jnp.float32) * 0.1

    # Deterministic BatchNorm parameters (inference mode), folded into scale/bias.
    c_idx = jnp.arange(planes, dtype=jnp.float32)
    g1, be1 = 1.0 + 0.10 * c_idx, 0.05 * c_idx
    m1, v1 = 0.01 * c_idx, 1.0 + 0.02 * c_idx
    g2, be2 = 1.0 - 0.05 * c_idx, -0.03 * c_idx
    m2, v2 = -0.02 * c_idx, 1.0 + 0.03 * c_idx
    s1, b1 = fold_bn(g1, be1, m1, v1)
    s2, b2 = fold_bn(g2, be2, m2, v2)

    # Kernel layout: NHWC activations, HWIO weights.
    x_nhwc = jnp.transpose(x_nchw, (0, 2, 3, 1))
    w1_hwio = jnp.transpose(w1_oihw, (2, 3, 1, 0))
    w2_hwio = jnp.transpose(w2_oihw, (2, 3, 1, 0))

    out = basic_block_pallas(x_nhwc, w1_hwio, s1, b1, w2_hwio, s2, b2)
    out = jax.block_until_ready(out)

    ref = reference_jax(x_nhwc, w1_hwio, s1, b1, w2_hwio, s2, b2)
    ref = jax.block_until_ready(ref)

    assert out.shape == (N, H, W, C)
    max_err = float(jnp.max(jnp.abs(out - ref)))
    assert jnp.allclose(out, ref, atol=1e-3, rtol=1e-3), (
        "mismatch vs reference: max err %e" % max_err)

    # Back to NCHW if the caller wants PyTorch layout.
    out_nchw = jnp.transpose(out, (0, 3, 1, 2))
    assert out_nchw.shape == (N, C, H, W)

    print("KERNEL_OK")
</pallas_src>

<mosaic_0001>
module attributes {stable_mosaic.version = 11 : i64} {
  func.func @basic_block_kernel(%arg0: i32, %arg1: memref<8x16x128xf32, #tpu.memory_space<vmem>>, %arg2: memref<3x128x128xbf16, #tpu.memory_space<vmem>>, %arg3: memref<1x128xf32, #tpu.memory_space<vmem>>, %arg4: memref<1x128xf32, #tpu.memory_space<vmem>>, %arg5: memref<3x128x128xbf16, #tpu.memory_space<vmem>>, %arg6: memref<1x128xf32, #tpu.memory_space<vmem>>, %arg7: memref<1x128xf32, #tpu.memory_space<vmem>>, %arg8: memref<8x16x128xf32, #tpu.memory_space<vmem>>, %arg9: memref<192x128xbf16, #tpu.memory_space<vmem>>) attributes {dimension_semantics = [#tpu.dimension_semantics<parallel>], iteration_bounds = array<i64: 4>, scalar_prefetch = 0 : i64, scratch_operands = 1 : i64, tpu.core_type = #tpu.core_type<tc>, window_params = [{transform_indices = @transform_0, window_bounds = array<i64: 8, 16, 128>}, {pipeline_mode = #tpu.pipeline_mode<synchronous>, transform_indices = @transform_1, window_bounds = array<i64: 3, 128, 128>}, {pipeline_mode = #tpu.pipeline_mode<synchronous>, transform_indices = @transform_2, window_bounds = array<i64: 1, 128>}, {pipeline_mode = #tpu.pipeline_mode<synchronous>, transform_indices = @transform_3, window_bounds = array<i64: 1, 128>}, {pipeline_mode = #tpu.pipeline_mode<synchronous>, transform_indices = @transform_4, window_bounds = array<i64: 3, 128, 128>}, {pipeline_mode = #tpu.pipeline_mode<synchronous>, transform_indices = @transform_5, window_bounds = array<i64: 1, 128>}, {pipeline_mode = #tpu.pipeline_mode<synchronous>, transform_indices = @transform_6, window_bounds = array<i64: 1, 128>}, {transform_indices = @transform_7, window_bounds = array<i64: 8, 16, 128>}]} {
    %cst = arith.constant 0.000000e+00 : bf16
    %0 = vector.broadcast %cst : bf16 to vector<192x128xbf16>
    %c0 = arith.constant 0 : index
    %c0_0 = arith.constant 0 : index
    %1 = vector.load %arg9[%c0, %c0_0] : memref<192x128xbf16, #tpu.memory_space<vmem>>, vector<192x128xbf16>
    tpu.vector_store %arg9[%c0, %c0_0], %0 {strides = array<i32>} : memref<192x128xbf16, #tpu.memory_space<vmem>>, vector<192x128xbf16>,
    %c0_1 = arith.constant 0 : index
    %c0_2 = arith.constant 0 : index
    %c0_3 = arith.constant 0 : index
    %2 = vector.load %arg1[%c0_1, %c0_2, %c0_3] : memref<8x16x128xf32, #tpu.memory_space<vmem>>, vector<1x16x128xf32>
    %3 = vector.shape_cast %2 : vector<1x16x128xf32> to vector<16x128xf32>
    %4 = arith.truncf %3 : vector<16x128xf32> to vector<16x128xbf16>
    %c1 = arith.constant 1 : index
    %c0_4 = arith.constant 0 : index
    %5 = vector.load %arg9[%c1, %c0_4] : memref<192x128xbf16, #tpu.memory_space<vmem>>, vector<16x128xbf16>
    tpu.vector_store %arg9[%c1, %c0_4], %4 {strides = array<i32>} : memref<192x128xbf16, #tpu.memory_space<vmem>>, vector<16x128xbf16>,
    %c1_5 = arith.constant 1 : index
    %c0_6 = arith.constant 0 : index
    %c0_7 = arith.constant 0 : index
    %6 = vector.load %arg1[%c1_5, %c0_6, %c0_7] : memref<8x16x128xf32, #tpu.memory_space<vmem>>, vector<1x16x128xf32>
    %7 = vector.shape_cast %6 : vector<1x16x128xf32> to vector<16x128xf32>
    %8 = arith.truncf %7 : vector<16x128xf32> to vector<16x128xbf16>
    %c25 = arith.constant 25 : index
    %c0_8 = arith.constant 0 : index
    %9 = vector.load %arg9[%c25, %c0_8] : memref<192x128xbf16, #tpu.memory_space<vmem>>, vector<16x128xbf16>
    tpu.vector_store %arg9[%c25, %c0_8], %8 {strides = array<i32>} : memref<192x128xbf16, #tpu.memory_space<vmem>>, vector<16x128xbf16>,
    %c2 = arith.constant 2 : index
    %c0_9 = arith.constant 0 : index
    %c0_10 = arith.constant 0 : index
    %10 = vector.load %arg1[%c2, %c0_9, %c0_10] : memref<8x16x128xf32, #tpu.memory_space<vmem>>, vector<1x16x128xf32>
    %11 = vector.shape_cast %10 : vector<1x16x128xf32> to vector<16x128xf32>
    %12 = arith.truncf %11 : vector<16x128xf32> to vector<16x128xbf16>
    %c49 = arith.constant 49 : index
    %c0_11 = arith.constant 0 : index
    %13 = vector.load %arg9[%c49, %c0_11] : memref<192x128xbf16, #tpu.memory_space<vmem>>, vector<16x128xbf16>
    tpu.vector_store %arg9[%c49, %c0_11], %12 {strides = array<i32>} : memref<192x128xbf16, #tpu.memory_space<vmem>>, vector<16x128xbf16>,
    %c3 = arith.constant 3 : index
    %c0_12 = arith.constant 0 : index
    %c0_13 = arith.constant 0 : index
    %14 = vector.load %arg1[%c3, %c0_12, %c0_13] : memref<8x16x128xf32, #tpu.memory_space<vmem>>, vector<1x16x128xf32>
    %15 = vector.shape_cast %14 : vector<1x16x128xf32> to vector<16x128xf32>
    %16 = arith.truncf %15 : vector<16x128xf32> to vector<16x128xbf16>
    %c73 = arith.constant 73 : index
    %c0_14 = arith.constant 0 : index
    %17 = vector.load %arg9[%c73, %c0_14] : memref<192x128xbf16, #tpu.memory_space<vmem>>, vector<16x128xbf16>
    tpu.vector_store %arg9[%c73, %c0_14], %16 {strides = array<i32>} : memref<192x128xbf16, #tpu.memory_space<vmem>>, vector<16x128xbf16>,
    %c4 = arith.constant 4 : index
    %c0_15 = arith.constant 0 : index
    %c0_16 = arith.constant 0 : index
    %18 = vector.load %arg1[%c4, %c0_15, %c0_16] : memref<8x16x128xf32, #tpu.memory_space<vmem>>, vector<1x16x128xf32>
    %19 = vector.shape_cast %18 : vector<1x16x128xf32> to vector<16x128xf32>
    %20 = arith.truncf %19 : vector<16x128xf32> to vector<16x128xbf16>
    %c97 = arith.constant 97 : index
    %c0_17 = arith.constant 0 : index
    %21 = vector.load %arg9[%c97, %c0_17] : memref<192x128xbf16, #tpu.memory_space<vmem>>, vector<16x128xbf16>
    tpu.vector_store %arg9[%c97, %c0_17], %20 {strides = array<i32>} : memref<192x128xbf16, #tpu.memory_space<vmem>>, vector<16x128xbf16>,
    %c5 = arith.constant 5 : index
    %c0_18 = arith.constant 0 : index
    %c0_19 = arith.constant 0 : index
    %22 = vector.load %arg1[%c5, %c0_18, %c0_19] : memref<8x16x128xf32, #tpu.memory_space<vmem>>, vector<1x16x128xf32>
    %23 = vector.shape_cast %22 : vector<1x16x128xf32> to vector<16x128xf32>
    %24 = arith.truncf %23 : vector<16x128xf32> to vector<16x128xbf16>
    %c121 = arith.constant 121 : index
    %c0_20 = arith.constant 0 : index
    %25 = vector.load %arg9[%c121, %c0_20] : memref<192x128xbf16, #tpu.memory_space<vmem>>, vector<16x128xbf16>
    tpu.vector_store %arg9[%c121, %c0_20], %24 {strides = array<i32>} : memref<192x128xbf16, #tpu.memory_space<vmem>>, vector<16x128xbf16>,
    %c6 = arith.constant 6 : index
    %c0_21 = arith.constant 0 : index
    %c0_22 = arith.constant 0 : index
    %26 = vector.load %arg1[%c6, %c0_21, %c0_22] : memref<8x16x128xf32, #tpu.memory_space<vmem>>, vector<1x16x128xf32>
    %27 = vector.shape_cast %26 : vector<1x16x128xf32> to vector<16x128xf32>
    %28 = arith.truncf %27 : vector<16x128xf32> to vector<16x128xbf16>
    %c145 = arith.constant 145 : index
    %c0_23 = arith.constant 0 : index
    %29 = vector.load %arg9[%c145, %c0_23] : memref<192x128xbf16, #tpu.memory_space<vmem>>, vector<16x128xbf16>
    tpu.vector_store %arg9[%c145, %c0_23], %28 {strides = array<i32>} : memref<192x128xbf16, #tpu.memory_space<vmem>>, vector<16x128xbf16>,
    %c7 = arith.constant 7 : index
    %c0_24 = arith.constant 0 : index
    %c0_25 = arith.constant 0 : index
    %30 = vector.load %arg1[%c7, %c0_24, %c0_25] : memref<8x16x128xf32, #tpu.memory_space<vmem>>, vector<1x16x128xf32>
    %31 = vector.shape_cast %30 : vector<1x16x128xf32> to vector<16x128xf32>
    %32 = arith.truncf %31 : vector<16x128xf32> to vector<16x128xbf16>
    %c169 = arith.constant 169 : index
    %c0_26 = arith.constant 0 : index
    %33 = vector.load %arg9[%c169, %c0_26] : memref<192x128xbf16, #tpu.memory_space<vmem>>, vector<16x128xbf16>
    tpu.vector_store %arg9[%c169, %c0_26], %32 {strides = array<i32>} : memref<192x128xbf16, #tpu.memory_space<vmem>>, vector<16x128xbf16>,
    %c0_27 = arith.constant 0 : index
    %c0_28 = arith.constant 0 : index
    %34 = vector.load %arg9[%c0_27, %c0_28] : memref<192x128xbf16, #tpu.memory_space<vmem>>, vector<190x128xbf16>
    %c0_29 = arith.constant 0 : index
    %c0_30 = arith.constant 0 : index
    %c0_31 = arith.constant 0 : index
    %35 = vector.load %arg2[%c0_29, %c0_30, %c0_31] : memref<3x128x128xbf16, #tpu.memory_space<vmem>>, vector<1x128x128xbf16>
    %36 = vector.shape_cast %35 : vector<1x128x128xbf16> to vector<128x128xbf16>
    %cst_32 = arith.constant dense<0.000000e+00> : vector<190x128xf32>
    %37 = tpu.matmul %34, %36, %cst_32 {dimension_numbers = #tpu.dot_dimension_numbers<[1], [0], [0], [1], [0, 0, 1, 1], [], []>} : vector<190x128xbf16>, vector<128x128xbf16>, vector<190x128xf32> -> vector<190x128xf32>
    %c1_33 = arith.constant 1 : index
    %c0_34 = arith.constant 0 : index
    %38 = vector.load %arg9[%c1_33, %c0_34] : memref<192x128xbf16, #tpu.memory_space<vmem>>, vector<190x128xbf16>
    %c1_35 = arith.constant 1 : index
    %c0_36 = arith.constant 0 : index
    %c0_37 = arith.constant 0 : index
    %39 = vector.load %arg2[%c1_35, %c0_36, %c0_37] : memref<3x128x128xbf16, #tpu.memory_space<vmem>>, vector<1x128x128xbf16>
    %40 = vector.shape_cast %39 : vector<1x128x128xbf16> to vector<128x128xbf16>
    %cst_38 = arith.constant dense<0.000000e+00> : vector<190x128xf32>
    %41 = tpu.matmul %38, %40, %cst_38 {dimension_numbers = #tpu.dot_dimension_numbers<[1], [0], [0], [1], [0, 0, 1, 1], [], []>} : vector<190x128xbf16>, vector<128x128xbf16>, vector<190x128xf32> -> vector<190x128xf32>
    %42 = arith.addf %37, %41 : vector<190x128xf32>
    %c2_39 = arith.constant 2 : index
    %c0_40 = arith.constant 0 : index
    %43 = vector.load %arg9[%c2_39, %c0_40] : memref<192x128xbf16, #tpu.memory_space<vmem>>, vector<190x128xbf16>
    %c2_41 = arith.constant 2 : index
    %c0_42 = arith.constant 0 : index
    %c0_43 = arith.constant 0 : index
    %44 = vector.load %arg2[%c2_41, %c0_42, %c0_43] : memref<3x128x128xbf16, #tpu.memory_space<vmem>>, vector<1x128x128xbf16>
    %45 = vector.shape_cast %44 : vector<1x128x128xbf16> to vector<128x128xbf16>
    %cst_44 = arith.constant dense<0.000000e+00> : vector<190x128xf32>
    %46 = tpu.matmul %43, %45, %cst_44 {dimension_numbers = #tpu.dot_dimension_numbers<[1], [0], [0], [1], [0, 0, 1, 1], [], []>} : vector<190x128xbf16>, vector<128x128xbf16>, vector<190x128xf32> -> vector<190x128xf32>
    %47 = arith.addf %42, %46 : vector<190x128xf32>
    %c0_45 = arith.constant 0 : index
    %c0_46 = arith.constant 0 : index
    %48 = vector.load %arg3[%c0_45, %c0_46] : memref<1x128xf32, #tpu.memory_space<vmem>>, vector<1x128xf32>
    %49 = vector.broadcast %48 : vector<1x128xf32> to vector<190x128xf32>
    %50 = arith.mulf %47, %49 : vector<190x128xf32>
    %c0_47 = arith.constant 0 : index
    %c0_48 = arith.constant 0 : index
    %51 = vector.load %arg4[%c0_47, %c0_48] : memref<1x128xf32, #tpu.memory_space<vmem>>, vector<1x128xf32>
    %52 = vector.broadcast %51 : vector<1x128xf32> to vector<190x128xf32>
    %53 = arith.addf %50, %52 : vector<190x128xf32>
    %cst_49 = arith.constant 0.000000e+00 : f32
    %54 = vector.broadcast %cst_49 : f32 to vector<190x128xf32>
    %55 = arith.maximumf %53, %54 : vector<190x128xf32>
    %56 = vector.extract_strided_slice %55 {offsets = [0, 0], sizes = [16, 128], strides = [1, 1]} : vector<190x128xf32> to vector<16x128xf32>
    %57 = arith.truncf %56 : vector<16x128xf32> to vector<16x128xbf16>
    %c1_50 = arith.constant 1 : index
    %c0_51 = arith.constant 0 : index
    %58 = vector.load %arg9[%c1_50, %c0_51] : memref<192x128xbf16, #tpu.memory_space<vmem>>, vector<16x128xbf16>
    tpu.vector_store %arg9[%c1_50, %c0_51], %57 {strides = array<i32>} : memref<192x128xbf16, #tpu.memory_space<vmem>>, vector<16x128xbf16>,
    %59 = vector.extract_strided_slice %55 {offsets = [24, 0], sizes = [16, 128], strides = [1, 1]} : vector<190x128xf32> to vector<16x128xf32>
    %60 = arith.truncf %59 : vector<16x128xf32> to vector<16x128xbf16>
    %c25_52 = arith.constant 25 : index
    %c0_53 = arith.constant 0 : index
    %61 = vector.load %arg9[%c25_52, %c0_53] : memref<192x128xbf16, #tpu.memory_space<vmem>>, vector<16x128xbf16>
    tpu.vector_store %arg9[%c25_52, %c0_53], %60 {strides = array<i32>} : memref<192x128xbf16, #tpu.memory_space<vmem>>, vector<16x128xbf16>,
    %62 = vector.extract_strided_slice %55 {offsets = [48, 0], sizes = [16, 128], strides = [1, 1]} : vector<190x128xf32> to vector<16x128xf32>
    %63 = arith.truncf %62 : vector<16x128xf32> to vector<16x128xbf16>
    %c49_54 = arith.constant 49 : index
    %c0_55 = arith.constant 0 : index
    %64 = vector.load %arg9[%c49_54, %c0_55] : memref<192x128xbf16, #tpu.memory_space<vmem>>, vector<16x128xbf16>
    tpu.vector_store %arg9[%c49_54, %c0_55], %63 {strides = array<i32>} : memref<192x128xbf16, #tpu.memory_space<vmem>>, vector<16x128xbf16>,
    %65 = vector.extract_strided_slice %55 {offsets = [72, 0], sizes = [16, 128], strides = [1, 1]} : vector<190x128xf32> to vector<16x128xf32>
    %66 = arith.truncf %65 : vector<16x128xf32> to vector<16x128xbf16>
    %c73_56 = arith.constant 73 : index
    %c0_57 = arith.constant 0 : index
    %67 = vector.load %arg9[%c73_56, %c0_57] : memref<192x128xbf16, #tpu.memory_space<vmem>>, vector<16x128xbf16>
    tpu.vector_store %arg9[%c73_56, %c0_57], %66 {strides = array<i32>} : memref<192x128xbf16, #tpu.memory_space<vmem>>, vector<16x128xbf16>,
    %68 = vector.extract_strided_slice %55 {offsets = [96, 0], sizes = [16, 128], strides = [1, 1]} : vector<190x128xf32> to vector<16x128xf32>
    %69 = arith.truncf %68 : vector<16x128xf32> to vector<16x128xbf16>
    %c97_58 = arith.constant 97 : index
    %c0_59 = arith.constant 0 : index
    %70 = vector.load %arg9[%c97_58, %c0_59] : memref<192x128xbf16, #tpu.memory_space<vmem>>, vector<16x128xbf16>
    tpu.vector_store %arg9[%c97_58, %c0_59], %69 {strides = array<i32>} : memref<192x128xbf16, #tpu.memory_space<vmem>>, vector<16x128xbf16>,
    %71 = vector.extract_strided_slice %55 {offsets = [120, 0], sizes = [16, 128], strides = [1, 1]} : vector<190x128xf32> to vector<16x128xf32>
    %72 = arith.truncf %71 : vector<16x128xf32> to vector<16x128xbf16>
    %c121_60 = arith.constant 121 : index
    %c0_61 = arith.constant 0 : index
    %73 = vector.load %arg9[%c121_60, %c0_61] : memref<192x128xbf16, #tpu.memory_space<vmem>>, vector<16x128xbf16>
    tpu.vector_store %arg9[%c121_60, %c0_61], %72 {strides = array<i32>} : memref<192x128xbf16, #tpu.memory_space<vmem>>, vector<16x128xbf16>,
    %74 = vector.extract_strided_slice %55 {offsets = [144, 0], sizes = [16, 128], strides = [1, 1]} : vector<190x128xf32> to vector<16x128xf32>
    %75 = arith.truncf %74 : vector<16x128xf32> to vector<16x128xbf16>
    %c145_62 = arith.constant 145 : index
    %c0_63 = arith.constant 0 : index
    %76 = vector.load %arg9[%c145_62, %c0_63] : memref<192x128xbf16, #tpu.memory_space<vmem>>, vector<16x128xbf16>
    tpu.vector_store %arg9[%c145_62, %c0_63], %75 {strides = array<i32>} : memref<192x128xbf16, #tpu.memory_space<vmem>>, vector<16x128xbf16>,
    %77 = vector.extract_strided_slice %55 {offsets = [168, 0], sizes = [16, 128], strides = [1, 1]} : vector<190x128xf32> to vector<16x128xf32>
    %78 = arith.truncf %77 : vector<16x128xf32> to vector<16x128xbf16>
    %c169_64 = arith.constant 169 : index
    %c0_65 = arith.constant 0 : index
    %79 = vector.load %arg9[%c169_64, %c0_65] : memref<192x128xbf16, #tpu.memory_space<vmem>>, vector<16x128xbf16>
    tpu.vector_store %arg9[%c169_64, %c0_65], %78 {strides = array<i32>} : memref<192x128xbf16, #tpu.memory_space<vmem>>, vector<16x128xbf16>,
    %c0_66 = arith.constant 0 : index
    %c0_67 = arith.constant 0 : index
    %80 = vector.load %arg9[%c0_66, %c0_67] : memref<192x128xbf16, #tpu.memory_space<vmem>>, vector<190x128xbf16>
    %c0_68 = arith.constant 0 : index
    %c0_69 = arith.constant 0 : index
    %c0_70 = arith.constant 0 : index
    %81 = vector.load %arg5[%c0_68, %c0_69, %c0_70] : memref<3x128x128xbf16, #tpu.memory_space<vmem>>, vector<1x128x128xbf16>
    %82 = vector.shape_cast %81 : vector<1x128x128xbf16> to vector<128x128xbf16>
    %cst_71 = arith.constant dense<0.000000e+00> : vector<190x128xf32>
    %83 = tpu.matmul %80, %82, %cst_71 {dimension_numbers = #tpu.dot_dimension_numbers<[1], [0], [0], [1], [0, 0, 1, 1], [], []>} : vector<190x128xbf16>, vector<128x128xbf16>, vector<190x128xf32> -> vector<190x128xf32>
    %c1_72 = arith.constant 1 : index
    %c0_73 = arith.constant 0 : index
    %84 = vector.load %arg9[%c1_72, %c0_73] : memref<192x128xbf16, #tpu.memory_space<vmem>>, vector<190x128xbf16>
    %c1_74 = arith.constant 1 : index
    %c0_75 = arith.constant 0 : index
    %c0_76 = arith.constant 0 : index
    %85 = vector.load %arg5[%c1_74, %c0_75, %c0_76] : memref<3x128x128xbf16, #tpu.memory_space<vmem>>, vector<1x128x128xbf16>
    %86 = vector.shape_cast %85 : vector<1x128x128xbf16> to vector<128x128xbf16>
    %cst_77 = arith.constant dense<0.000000e+00> : vector<190x128xf32>
    %87 = tpu.matmul %84, %86, %cst_77 {dimension_numbers = #tpu.dot_dimension_numbers<[1], [0], [0], [1], [0, 0, 1, 1], [], []>} : vector<190x128xbf16>, vector<128x128xbf16>, vector<190x128xf32> -> vector<190x128xf32>
    %88 = arith.addf %83, %87 : vector<190x128xf32>
    %c2_78 = arith.constant 2 : index
    %c0_79 = arith.constant 0 : index
    %89 = vector.load %arg9[%c2_78, %c0_79] : memref<192x128xbf16, #tpu.memory_space<vmem>>, vector<190x128xbf16>
    %c2_80 = arith.constant 2 : index
    %c0_81 = arith.constant 0 : index
    %c0_82 = arith.constant 0 : index
    %90 = vector.load %arg5[%c2_80, %c0_81, %c0_82] : memref<3x128x128xbf16, #tpu.memory_space<vmem>>, vector<1x128x128xbf16>
    %91 = vector.shape_cast %90 : vector<1x128x128xbf16> to vector<128x128xbf16>
    %cst_83 = arith.constant dense<0.000000e+00> : vector<190x128xf32>
    %92 = tpu.matmul %89, %91, %cst_83 {dimension_numbers = #tpu.dot_dimension_numbers<[1], [0], [0], [1], [0, 0, 1, 1], [], []>} : vector<190x128xbf16>, vector<128x128xbf16>, vector<190x128xf32> -> vector<190x128xf32>
    %93 = arith.addf %88, %92 : vector<190x128xf32>
    %c0_84 = arith.constant 0 : index
    %c0_85 = arith.constant 0 : index
    %94 = vector.load %arg6[%c0_84, %c0_85] : memref<1x128xf32, #tpu.memory_space<vmem>>, vector<1x128xf32>
    %95 = vector.broadcast %94 : vector<1x128xf32> to vector<190x128xf32>
    %96 = arith.mulf %93, %95 : vector<190x128xf32>
    %c0_86 = arith.constant 0 : index
    %c0_87 = arith.constant 0 : index
    %97 = vector.load %arg7[%c0_86, %c0_87] : memref<1x128xf32, #tpu.memory_space<vmem>>, vector<1x128xf32>
    %98 = vector.broadcast %97 : vector<1x128xf32> to vector<190x128xf32>
    %99 = arith.addf %96, %98 : vector<190x128xf32>
    %100 = vector.extract_strided_slice %99 {offsets = [0, 0], sizes = [16, 128], strides = [1, 1]} : vector<190x128xf32> to vector<16x128xf32>
    %c0_88 = arith.constant 0 : index
    %c0_89 = arith.constant 0 : index
    %c0_90 = arith.constant 0 : index
    %101 = vector.load %arg1[%c0_88, %c0_89, %c0_90] : memref<8x16x128xf32, #tpu.memory_space<vmem>>, vector<1x16x128xf32>
    %102 = vector.shape_cast %101 : vector<1x16x128xf32> to vector<16x128xf32>
    %103 = arith.addf %100, %102 : vector<16x128xf32>
    %cst_91 = arith.constant 0.000000e+00 : f32
    %104 = vector.broadcast %cst_91 : f32 to vector<16x128xf32>
    %105 = arith.maximumf %103, %104 : vector<16x128xf32>
    %c0_92 = arith.constant 0 : index
    %c0_93 = arith.constant 0 : index
    %c0_94 = arith.constant 0 : index
    %106 = vector.load %arg8[%c0_92, %c0_93, %c0_94] : memref<8x16x128xf32, #tpu.memory_space<vmem>>, vector<1x16x128xf32>
    %107 = vector.shape_cast %106 : vector<1x16x128xf32> to vector<16x128xf32>
    %108 = vector.shape_cast %105 : vector<16x128xf32> to vector<1x16x128xf32>
    tpu.vector_store %arg8[%c0_92, %c0_93, %c0_94], %108 {strides = array<i32>} : memref<8x16x128xf32, #tpu.memory_space<vmem>>, vector<1x16x128xf32>,
    %109 = vector.extract_strided_slice %99 {offsets = [24, 0], sizes = [16, 128], strides = [1, 1]} : vector<190x128xf32> to vector<16x128xf32>
    %c1_95 = arith.constant 1 : index
    %c0_96 = arith.constant 0 : index
    %c0_97 = arith.constant 0 : index
    %110 = vector.load %arg1[%c1_95, %c0_96, %c0_97] : memref<8x16x128xf32, #tpu.memory_space<vmem>>, vector<1x16x128xf32>
    %111 = vector.shape_cast %110 : vector<1x16x128xf32> to vector<16x128xf32>
    %112 = arith.addf %109, %111 : vector<16x128xf32>
    %cst_98 = arith.constant 0.000000e+00 : f32
    %113 = vector.broadcast %cst_98 : f32 to vector<16x128xf32>
    %114 = arith.maximumf %112, %113 : vector<16x128xf32>
    %c1_99 = arith.constant 1 : index
    %c0_100 = arith.constant 0 : index
    %c0_101 = arith.constant 0 : index
    %115 = vector.load %arg8[%c1_99, %c0_100, %c0_101] : memref<8x16x128xf32, #tpu.memory_space<vmem>>, vector<1x16x128xf32>
    %116 = vector.shape_cast %115 : vector<1x16x128xf32> to vector<16x128xf32>
    %117 = vector.shape_cast %114 : vector<16x128xf32> to vector<1x16x128xf32>
    tpu.vector_store %arg8[%c1_99, %c0_100, %c0_101], %117 {strides = array<i32>} : memref<8x16x128xf32, #tpu.memory_space<vmem>>, vector<1x16x128xf32>,
    %118 = vector.extract_strided_slice %99 {offsets = [48, 0], sizes = [16, 128], strides = [1, 1]} : vector<190x128xf32> to vector<16x128xf32>
    %c2_102 = arith.constant 2 : index
    %c0_103 = arith.constant 0 : index
    %c0_104 = arith.constant 0 : index
    %119 = vector.load %arg1[%c2_102, %c0_103, %c0_104] : memref<8x16x128xf32, #tpu.memory_space<vmem>>, vector<1x16x128xf32>
    %120 = vector.shape_cast %119 : vector<1x16x128xf32> to vector<16x128xf32>
    %121 = arith.addf %118, %120 : vector<16x128xf32>
    %cst_105 = arith.constant 0.000000e+00 : f32
    %122 = vector.broadcast %cst_105 : f32 to vector<16x128xf32>
    %123 = arith.maximumf %121, %122 : vector<16x128xf32>
    %c2_106 = arith.constant 2 : index
    %c0_107 = arith.constant 0 : index
    %c0_108 = arith.constant 0 : index
    %124 = vector.load %arg8[%c2_106, %c0_107, %c0_108] : memref<8x16x128xf32, #tpu.memory_space<vmem>>, vector<1x16x128xf32>
    %125 = vector.shape_cast %124 : vector<1x16x128xf32> to vector<16x128xf32>
    %126 = vector.shape_cast %123 : vector<16x128xf32> to vector<1x16x128xf32>
    tpu.vector_store %arg8[%c2_106, %c0_107, %c0_108], %126 {strides = array<i32>} : memref<8x16x128xf32, #tpu.memory_space<vmem>>, vector<1x16x128xf32>,
    %127 = vector.extract_strided_slice %99 {offsets = [72, 0], sizes = [16, 128], strides = [1, 1]} : vector<190x128xf32> to vector<16x128xf32>
    %c3_109 = arith.constant 3 : index
    %c0_110 = arith.constant 0 : index
    %c0_111 = arith.constant 0 : index
    %128 = vector.load %arg1[%c3_109, %c0_110, %c0_111] : memref<8x16x128xf32, #tpu.memory_space<vmem>>, vector<1x16x128xf32>
    %129 = vector.shape_cast %128 : vector<1x16x128xf32> to vector<16x128xf32>
    %130 = arith.addf %127, %129 : vector<16x128xf32>
    %cst_112 = arith.constant 0.000000e+00 : f32
    %131 = vector.broadcast %cst_112 : f32 to vector<16x128xf32>
    %132 = arith.maximumf %130, %131 : vector<16x128xf32>
    %c3_113 = arith.constant 3 : index
    %c0_114 = arith.constant 0 : index
    %c0_115 = arith.constant 0 : index
    %133 = vector.load %arg8[%c3_113, %c0_114, %c0_115] : memref<8x16x128xf32, #tpu.memory_space<vmem>>, vector<1x16x128xf32>
    %134 = vector.shape_cast %133 : vector<1x16x128xf32> to vector<16x128xf32>
    %135 = vector.shape_cast %132 : vector<16x128xf32> to vector<1x16x128xf32>
    tpu.vector_store %arg8[%c3_113, %c0_114, %c0_115], %135 {strides = array<i32>} : memref<8x16x128xf32, #tpu.memory_space<vmem>>, vector<1x16x128xf32>,
    %136 = vector.extract_strided_slice %99 {offsets = [96, 0], sizes = [16, 128], strides = [1, 1]} : vector<190x128xf32> to vector<16x128xf32>
    %c4_116 = arith.constant 4 : index
    %c0_117 = arith.constant 0 : index
    %c0_118 = arith.constant 0 : index
    %137 = vector.load %arg1[%c4_116, %c0_117, %c0_118] : memref<8x16x128xf32, #tpu.memory_space<vmem>>, vector<1x16x128xf32>
    %138 = vector.shape_cast %137 : vector<1x16x128xf32> to vector<16x128xf32>
    %139 = arith.addf %136, %138 : vector<16x128xf32>
    %cst_119 = arith.constant 0.000000e+00 : f32
    %140 = vector.broadcast %cst_119 : f32 to vector<16x128xf32>
    %141 = arith.maximumf %139, %140 : vector<16x128xf32>
    %c4_120 = arith.constant 4 : index
    %c0_121 = arith.constant 0 : index
    %c0_122 = arith.constant 0 : index
    %142 = vector.load %arg8[%c4_120, %c0_121, %c0_122] : memref<8x16x128xf32, #tpu.memory_space<vmem>>, vector<1x16x128xf32>
    %143 = vector.shape_cast %142 : vector<1x16x128xf32> to vector<16x128xf32>
    %144 = vector.shape_cast %141 : vector<16x128xf32> to vector<1x16x128xf32>
    tpu.vector_store %arg8[%c4_120, %c0_121, %c0_122], %144 {strides = array<i32>} : memref<8x16x128xf32, #tpu.memory_space<vmem>>, vector<1x16x128xf32>,
    %145 = vector.extract_strided_slice %99 {offsets = [120, 0], sizes = [16, 128], strides = [1, 1]} : vector<190x128xf32> to vector<16x128xf32>
    %c5_123 = arith.constant 5 : index
    %c0_124 = arith.constant 0 : index
    %c0_125 = arith.constant 0 : index
    %146 = vector.load %arg1[%c5_123, %c0_124, %c0_125] : memref<8x16x128xf32, #tpu.memory_space<vmem>>, vector<1x16x128xf32>
    %147 = vector.shape_cast %146 : vector<1x16x128xf32> to vector<16x128xf32>
    %148 = arith.addf %145, %147 : vector<16x128xf32>
    %cst_126 = arith.constant 0.000000e+00 : f32
    %149 = vector.broadcast %cst_126 : f32 to vector<16x128xf32>
    %150 = arith.maximumf %148, %149 : vector<16x128xf32>
    %c5_127 = arith.constant 5 : index
    %c0_128 = arith.constant 0 : index
    %c0_129 = arith.constant 0 : index
    %151 = vector.load %arg8[%c5_127, %c0_128, %c0_129] : memref<8x16x128xf32, #tpu.memory_space<vmem>>, vector<1x16x128xf32>
    %152 = vector.shape_cast %151 : vector<1x16x128xf32> to vector<16x128xf32>
    %153 = vector.shape_cast %150 : vector<16x128xf32> to vector<1x16x128xf32>
    tpu.vector_store %arg8[%c5_127, %c0_128, %c0_129], %153 {strides = array<i32>} : memref<8x16x128xf32, #tpu.memory_space<vmem>>, vector<1x16x128xf32>,
    %154 = vector.extract_strided_slice %99 {offsets = [144, 0], sizes = [16, 128], strides = [1, 1]} : vector<190x128xf32> to vector<16x128xf32>
    %c6_130 = arith.constant 6 : index
    %c0_131 = arith.constant 0 : index
    %c0_132 = arith.constant 0 : index
    %155 = vector.load %arg1[%c6_130, %c0_131, %c0_132] : memref<8x16x128xf32, #tpu.memory_space<vmem>>, vector<1x16x128xf32>
    %156 = vector.shape_cast %155 : vector<1x16x128xf32> to vector<16x128xf32>
    %157 = arith.addf %154, %156 : vector<16x128xf32>
    %cst_133 = arith.constant 0.000000e+00 : f32
    %158 = vector.broadcast %cst_133 : f32 to vector<16x128xf32>
    %159 = arith.maximumf %157, %158 : vector<16x128xf32>
    %c6_134 = arith.constant 6 : index
    %c0_135 = arith.constant 0 : index
    %c0_136 = arith.constant 0 : index
    %160 = vector.load %arg8[%c6_134, %c0_135, %c0_136] : memref<8x16x128xf32, #tpu.memory_space<vmem>>, vector<1x16x128xf32>
    %161 = vector.shape_cast %160 : vector<1x16x128xf32> to vector<16x128xf32>
    %162 = vector.shape_cast %159 : vector<16x128xf32> to vector<1x16x128xf32>
    tpu.vector_store %arg8[%c6_134, %c0_135, %c0_136], %162 {strides = array<i32>} : memref<8x16x128xf32, #tpu.memory_space<vmem>>, vector<1x16x128xf32>,
    %163 = vector.extract_strided_slice %99 {offsets = [168, 0], sizes = [16, 128], strides = [1, 1]} : vector<190x128xf32> to vector<16x128xf32>
    %c7_137 = arith.constant 7 : index
    %c0_138 = arith.constant 0 : index
    %c0_139 = arith.constant 0 : index
    %164 = vector.load %arg1[%c7_137, %c0_138, %c0_139] : memref<8x16x128xf32, #tpu.memory_space<vmem>>, vector<1x16x128xf32>
    %165 = vector.shape_cast %164 : vector<1x16x128xf32> to vector<16x128xf32>
    %166 = arith.addf %163, %165 : vector<16x128xf32>
    %cst_140 = arith.constant 0.000000e+00 : f32
    %167 = vector.broadcast %cst_140 : f32 to vector<16x128xf32>
    %168 = arith.maximumf %166, %167 : vector<16x128xf32>
    %c7_141 = arith.constant 7 : index
    %c0_142 = arith.constant 0 : index
    %c0_143 = arith.constant 0 : index
    %169 = vector.load %arg8[%c7_141, %c0_142, %c0_143] : memref<8x16x128xf32, #tpu.memory_space<vmem>>, vector<1x16x128xf32>
    %170 = vector.shape_cast %169 : vector<1x16x128xf32> to vector<16x128xf32>
    %171 = vector.shape_cast %168 : vector<16x128xf32> to vector<1x16x128xf32>
    tpu.vector_store %arg8[%c7_141, %c0_142, %c0_143], %171 {strides = array<i32>} : memref<8x16x128xf32, #tpu.memory_space<vmem>>, vector<1x16x128xf32>,
    return
  }
  func.func @transform_0(%arg0: i32) -> (i32, i32, i32) {
    %c0_i32 = arith.constant 0 : i32
    %c0_i32_0 = arith.constant 0 : i32
    %c0_i32_1 = arith.constant 0 : i32
    return %arg0, %c0_i32, %c0_i32_0 : i32, i32, i32
  }
  func.func @transform_1(%arg0: i32) -> (i32, i32, i32) {
    %c0_i32 = arith.constant 0 : i32
    %c0_i32_0 = arith.constant 0 : i32
    %c0_i32_1 = arith.constant 0 : i32
    %c0_i32_2 = arith.constant 0 : i32
    return %c0_i32, %c0_i32_0, %c0_i32_1 : i32, i32, i32
  }
  func.func @transform_2(%arg0: i32) -> (i32, i32) {
    %c0_i32 = arith.constant 0 : i32
    %c0_i32_0 = arith.constant 0 : i32
    %c0_i32_1 = arith.constant 0 : i32
    return %c0_i32, %c0_i32_0 : i32, i32
  }
  func.func @transform_3(%arg0: i32) -> (i32, i32) {
    %c0_i32 = arith.constant 0 : i32
    %c0_i32_0 = arith.constant 0 : i32
    %c0_i32_1 = arith.constant 0 : i32
    return %c0_i32, %c0_i32_0 : i32, i32
  }
  func.func @transform_4(%arg0: i32) -> (i32, i32, i32) {
    %c0_i32 = arith.constant 0 : i32
    %c0_i32_0 = arith.constant 0 : i32
    %c0_i32_1 = arith.constant 0 : i32
    %c0_i32_2 = arith.constant 0 : i32
    return %c0_i32, %c0_i32_0, %c0_i32_1 : i32, i32, i32
  }
  func.func @transform_5(%arg0: i32) -> (i32, i32) {
    %c0_i32 = arith.constant 0 : i32
    %c0_i32_0 = arith.constant 0 : i32
    %c0_i32_1 = arith.constant 0 : i32
    return %c0_i32, %c0_i32_0 : i32, i32
  }
  func.func @transform_6(%arg0: i32) -> (i32, i32) {
    %c0_i32 = arith.constant 0 : i32
    %c0_i32_0 = arith.constant 0 : i32
    %c0_i32_1 = arith.constant 0 : i32
    return %c0_i32, %c0_i32_0 : i32, i32
  }
  func.func @transform_7(%arg0: i32) -> (i32, i32, i32) {
    %c0_i32 = arith.constant 0 : i32
    %c0_i32_0 = arith.constant 0 : i32
    %c0_i32_1 = arith.constant 0 : i32
    return %arg0, %c0_i32, %c0_i32_0 : i32, i32, i32
  }
}

</mosaic_0001>

<llo_original>
// kernel: tpu_custom_call.1
$region0: #{tpu_custom_call.1}
  #allocation0 [shape = 'u32[]', space=smem, size = 0x4, offset = 0x4, fixed_abs, tag = 'smem constant byte address 0x4 - core index']
  #allocation1 [shape = 'u32[144,128]{1,0:T(1,128)}', space=vmem, size = 0x12000, scoped, tag = 'internal scratch']
  #allocation2 [shape = 'bf16[192,128]{1,0:T(16,128)(2,1)}', space=vmem, size = 0xc000, scoped, tag = 'scratch operand']
  %s0 = inlined_call_operand.hbm [shape: f32[32,16,128], index: 0, kind: input, shape index: {}]
  %s1 = inlined_call_operand.hbm [shape: bf16[3,128,128], index: 1, kind: input, shape index: {}]
  %s2 = inlined_call_operand.vmem [shape: f32[1,128], index: 2, kind: input, shape index: {}]
  %s3 = inlined_call_operand.vmem [shape: f32[1,128], index: 3, kind: input, shape index: {}]
  %s4 = inlined_call_operand.hbm [shape: bf16[3,128,128], index: 4, kind: input, shape index: {}]
  %s5 = inlined_call_operand.vmem [shape: f32[1,128], index: 5, kind: input, shape index: {}]
  %s6 = inlined_call_operand.vmem [shape: f32[1,128], index: 6, kind: input, shape index: {}]
  %s7 = inlined_call_operand.hbm [shape: f32[32,16,128], index: 7, kind: output, shape index: {}]
  %s8 = sld [smem:[#allocation0]]
  $region73: #{tpu_custom_call.1} parent=0
    _
  %s10 = ssub.s32 1, %s8
  %s11 = scalar_select 0, %s10, %s8
  $region1: #{tpu_custom_call.1} parent=0
    #allocation3 [shape = 'u8[131072]{0}', space=vmem, size = 0x20000, scoped, tag = 'input window, operand 0']
    #allocation4 [shape = 's32[2]{0}', space=sflag, size = 0x8, scoped, tag = 'scoped memory for tpu_custom_call.1']
    #allocation5 [shape = 's32[2]{0}', space=sflag, size = 0x8, scoped, tag = 'scoped memory for tpu_custom_call.1']
    #allocation6 [shape = 'u8[98304]{0}', space=vmem, size = 0x18000, scoped, tag = 'input window, operand 1, single buffered']
    #allocation7 [shape = 's32[1]{0}', space=sflag, size = 0x4, scoped, tag = 'scoped memory for tpu_custom_call.1']
    #allocation8 [shape = 'u8[98304]{0}', space=vmem, size = 0x18000, scoped, tag = 'input window, operand 4, single buffered']
    #allocation9 [shape = 'u8[131072]{0}', space=vmem, size = 0x20000, scoped, tag = 'output window, operand 0']
    %12 = vsyncpa [#allocation4], 0
    %s13 = scalar_lea.sflag [#allocation4], 1
    %14 = vsyncpa %s13, 0
    %15 = vsyncpa [#allocation7], 0
    %16 = vsyncpa [#allocation5], 0
    %s17 = scalar_lea.sflag [#allocation5], 1
    %18 = vsyncpa %s17, 0
    loop: start=0, step=1, limit=6
    $region2: #{tpu_custom_call.1} parent=1 // loop_pre_header
      _
    $region3: #{tpu_custom_call.1} parent=1 // loop_header
      %s20 = sphi 0, %s24
      %p21 = scmp.ge.s32.totalorder %s20, 6
      %s30 = sphi 0, %s32
      %s33 = sphi 0, %s30
      %s34 = sphi 0, %s33
      %s50 = sphi 0, %s34
      %s54 = sphi 0, %s54
      %s56 = sphi 0, %s54
      %s57 = sphi 0, %s56
      %s71 = sphi 0, %s57
      %s75 = sphi 0, %s75
      %s77 = sphi 0, %s75
      %s78 = sphi 0, %s77
      %s92 = sphi 0, %s78
      %s96 = sphi 0, %s96
      %s98 = sphi 0, %s96
      %s99 = sphi 0, %s98
      %s113 = sphi 0, %s99
      %s117 = sphi 0, %s117
      %s119 = sphi 0, %s117
      %s120 = sphi 0, %s119
      %s134 = sphi 0, %s120
      %s138 = sphi 0, %s138
      %s140 = sphi 0, %s138
      %s141 = sphi 0, %s140
      %s155 = sphi 0, %s141
      %s159 = sphi 0, %s159
      %s161 = sphi 0, %s159
      %s162 = sphi 0, %s161
      %s176 = sphi 0, %s162
      %s182 = sphi 0, %s184
      %s185 = sphi 0, %s182
      %s186 = sphi 0, %s185
      %s202 = sphi 0, %s186
    $region4: #{tpu_custom_call.1} parent=1 // loop_header_branch
      %23 = sbr.rel (%p21) target = $region8
    $region5: #{tpu_custom_call.1} parent=1 // loop_body
      %s25 = ssub.s32 %s20, 1
      %s26 = ssub.s32 %s20, 2
      %s27 = sadd.s32 %s20, 1
      %s28 = ssub.s32 %s20, %s27
      %p29 = scmp.eq.s32.totalorder %s28, 0
      %s31 = sadd.s32 %s30, 1
      %s32 = scalar_select %p29, %s30, %s31
      %p35 = pneg %p29
      %p36 = scmp.eq.s32.totalorder %s20, 3
      %p37 = por %p35, %p36
      %p38 = scmp.ne.s32.totalorder %s30, %s33
      %p39 = scmp.eq.s32.totalorder %s20, 0
      %p40 = por %p38, %p39
      %p41 = scmp.ne.s32.totalorder %s30, %s33
      %p42 = scmp.eq.s32.totalorder %s25, 3
      %p43 = por %p41, %p42
      %p44 = scmp.ne.s32.totalorder %s33, %s34
      %p45 = scmp.eq.s32.totalorder %s25, 0
      %p46 = por %p44, %p45
      %p47 = scmp.ne.s32.totalorder %s33, %s34
      %p48 = scmp.eq.s32.totalorder %s26, 3
      %p49 = por %p47, %p48
      %p51 = scmp.ne.s32.totalorder %s34, %s50
      %p52 = scmp.eq.s32.totalorder %s26, 0
      %p53 = por %p51, %p52
      %s55 = sadd.s32 %s54, 1
      %p58 = scmp.eq.s32.totalorder %s20, 3
      %p59 = scmp.ne.s32.totalorder %s54, %s56
      %p60 = scmp.eq.s32.totalorder %s20, 0
      %p61 = por %p59, %p60
      %p62 = scmp.ne.s32.totalorder %s54, %s56
      %p63 = scmp.eq.s32.totalorder %s25, 3
      %p64 = por %p62, %p63
      %p65 = scmp.ne.s32.totalorder %s56, %s57
      %p66 = scmp.eq.s32.totalorder %s25, 0
      %p67 = por %p65, %p66
      %p68 = scmp.ne.s32.totalorder %s56, %s57
      %p69 = scmp.eq.s32.totalorder %s26, 3
      %p70 = por %p68, %p69
      %p72 = scmp.ne.s32.totalorder %s57, %s71
      %p73 = scmp.eq.s32.totalorder %s26, 0
      %p74 = por %p72, %p73
      %s76 = sadd.s32 %s75, 1
      %p79 = scmp.eq.s32.totalorder %s20, 3
      %p80 = scmp.ne.s32.totalorder %s75, %s77
      %p81 = scmp.eq.s32.totalorder %s20, 0
      %p82 = por %p80, %p81
      %p83 = scmp.ne.s32.totalorder %s75, %s77
      %p84 = scmp.eq.s32.totalorder %s25, 3
      %p85 = por %p83, %p84
      %p86 = scmp.ne.s32.totalorder %s77, %s78
      %p87 = scmp.eq.s32.totalorder %s25, 0
      %p88 = por %p86, %p87
      %p89 = scmp.ne.s32.totalorder %s77, %s78
      %p90 = scmp.eq.s32.totalorder %s26, 3
      %p91 = por %p89, %p90
      %p93 = scmp.ne.s32.totalorder %s78, %s92
      %p94 = scmp.eq.s32.totalorder %s26, 0
      %p95 = por %p93, %p94
      %s97 = sadd.s32 %s96, 1
      %p100 = scmp.eq.s32.totalorder %s20, 3
      %p101 = scmp.ne.s32.totalorder %s96, %s98
      %p102 = scmp.eq.s32.totalorder %s20, 0
      %p103 = por %p101, %p102
      %p104 = scmp.ne.s32.totalorder %s96, %s98
      %p105 = scmp.eq.s32.totalorder %s25, 3
      %p106 = por %p104, %p105
      %p107 = scmp.ne.s32.totalorder %s98, %s99
      %p108 = scmp.eq.s32.totalorder %s25, 0
      %p109 = por %p107, %p108
      %p110 = scmp.ne.s32.totalorder %s98, %s99
      %p111 = scmp.eq.s32.totalorder %s26, 3
      %p112 = por %p110, %p111
      %p114 = scmp.ne.s32.totalorder %s99, %s113
      %p115 = scmp.eq.s32.totalorder %s26, 0
      %p116 = por %p114, %p115
      %s118 = sadd.s32 %s117, 1
      %p121 = scmp.eq.s32.totalorder %s20, 3
      %p122 = scmp.ne.s32.totalorder %s117, %s119
      %p123 = scmp.eq.s32.totalorder %s20, 0
      %p124 = por %p122, %p123
      %p125 = scmp.ne.s32.totalorder %s117, %s119
      %p126 = scmp.eq.s32.totalorder %s25, 3
      %p127 = por %p125, %p126
      %p128 = scmp.ne.s32.totalorder %s119, %s120
      %p129 = scmp.eq.s32.totalorder %s25, 0
      %p130 = por %p128, %p129
      %p131 = scmp.ne.s32.totalorder %s119, %s120
      %p132 = scmp.eq.s32.totalorder %s26, 3
      %p133 = por %p131, %p132
      %p135 = scmp.ne.s32.totalorder %s120, %s134
      %p136 = scmp.eq.s32.totalorder %s26, 0
      %p137 = por %p135, %p136
      %s139 = sadd.s32 %s138, 1
      %p142 = scmp.eq.s32.totalorder %s20, 3
      %p143 = scmp.ne.s32.totalorder %s138, %s140
      %p144 = scmp.eq.s32.totalorder %s20, 0
      %p145 = por %p143, %p144
      %p146 = scmp.ne.s32.totalorder %s138, %s140
      %p147 = scmp.eq.s32.totalorder %s25, 3
      %p148 = por %p146, %p147
      %p149 = scmp.ne.s32.totalorder %s140, %s141
      %p150 = scmp.eq.s32.totalorder %s25, 0
      %p151 = por %p149, %p150
      %p152 = scmp.ne.s32.totalorder %s140, %s141
      %p153 = scmp.eq.s32.totalorder %s26, 3
      %p154 = por %p152, %p153
      %p156 = scmp.ne.s32.totalorder %s141, %s155
      %p157 = scmp.eq.s32.totalorder %s26, 0
      %p158 = por %p156, %p157
      %s160 = sadd.s32 %s159, 1
      %p163 = scmp.eq.s32.totalorder %s20, 3
      %p164 = scmp.ne.s32.totalorder %s159, %s161
      %p165 = scmp.eq.s32.totalorder %s20, 0
      %p166 = por %p164, %p165
      %p167 = scmp.ne.s32.totalorder %s159, %s161
      %p168 = scmp.eq.s32.totalorder %s25, 3
      %p169 = por %p167, %p168
      %p170 = scmp.ne.s32.totalorder %s161, %s162
      %p171 = scmp.eq.s32.totalorder %s25, 0
      %p172 = por %p170, %p171
      %p173 = scmp.ne.s32.totalorder %s161, %s162
      %p174 = scmp.eq.s32.totalorder %s26, 3
      %p175 = por %p173, %p174
      %p177 = scmp.ne.s32.totalorder %s162, %s176
      %p178 = scmp.eq.s32.totalorder %s26, 0
      %p179 = por %p177, %p178
      %s180 = ssub.s32 %s20, %s27
      %p181 = scmp.eq.s32.totalorder %s180, 0
      %s183 = sadd.s32 %s182, 1
      %s184 = scalar_select %p181, %s182, %s183
      %p187 = pneg %p181
      %p188 = scmp.eq.s32.totalorder %s20, 3
      %p189 = por %p187, %p188
      %p190 = scmp.ne.s32.totalorder %s182, %s185
      %p191 = scmp.eq.s32.totalorder %s20, 0
      %p192 = por %p190, %p191
      %p193 = scmp.ne.s32.totalorder %s182, %s185
      %p194 = scmp.eq.s32.totalorder %s25, 3
      %p195 = por %p193, %p194
      %p196 = scmp.ne.s32.totalorder %s185, %s186
      %p197 = scmp.eq.s32.totalorder %s25, 0
      %p198 = por %p196, %p197
      %p199 = scmp.ne.s32.totalorder %s185, %s186
      %p200 = scmp.eq.s32.totalorder %s26, 3
      %p201 = por %p199, %p200
      %p203 = scmp.ne.s32.totalorder %s186, %s202
      %p204 = scmp.eq.s32.totalorder %s26, 0
      %p205 = por %p203, %p204
      %p206 = scmp.le.s32.totalorder 1, %s20
      %p207 = scmp.lt.s32.totalorder %s20, 5
      %p208 = pnand %p206, %p207
      %p209 = pneg %p208
      // Predicated region
      $region9: #{tpu_custom_call.1} parent=5 // pred_check
        _
      $region10: #{tpu_custom_call.1} parent=5 // pred_check_branch
        %211 = sbr.rel (%p208) target = $region12
      $region11: #{tpu_custom_call.1} parent=5 // pred_region
        %s212 = ssub.s32 %s20, 1
        // Predicated region
        $region13: #{tpu_custom_call.1} parent=11 // pred_check
          %p213 = pneg %p67
        $region14: #{tpu_custom_call.1} parent=11 // pred_check_branch
          %215 = sbr.rel (%p213) target = $region16
        $region15: #{tpu_custom_call.1} parent=11 // pred_region
          %s217 = ssub.s32 3072, 3072
          %218 = vsyncadd [#allocation7], %s217
          %s219 = sshll.u32 [#allocation6], 4
          %s220 = int_to_ptr.vmem [resolvable:$true] %s219
          %225 = dma.hbm_to_vmem [thread:$0]  %s1, 3072, %s220, [#allocation7], 64, 64, 4
        $region16: #{tpu_custom_call.1} parent=11 // pred_fallthru
          _
        // Predicated region
        $region17: #{tpu_custom_call.1} parent=11 // pred_check
          %p226 = pneg %p88
        $region18: #{tpu_custom_call.1} parent=11 // pred_check_branch
          %228 = sbr.rel (%p226) target = $region20
        $region19: #{tpu_custom_call.1} parent=11 // pred_region
          _
        $region20: #{tpu_custom_call.1} parent=11 // pred_fallthru
          _
        // Predicated region
        $region21: #{tpu_custom_call.1} parent=11 // pred_check
          %p229 = pneg %p109
        $region22: #{tpu_custom_call.1} parent=11 // pred_check_branch
          %231 = sbr.rel (%p229) target = $region24
        $region23: #{tpu_custom_call.1} parent=11 // pred_region
          _
        $region24: #{tpu_custom_call.1} parent=11 // pred_fallthru
          _
        // Predicated region
        $region25: #{tpu_custom_call.1} parent=11 // pred_check
          %p232 = pneg %p130
        $region26: #{tpu_custom_call.1} parent=11 // pred_check_branch
          %234 = sbr.rel (%p232) target = $region28
        $region27: #{tpu_custom_call.1} parent=11 // pred_region
          %s236 = ssub.s32 3072, 3072
          %237 = vsyncadd [#allocation7], %s236
          %s238 = sshll.u32 [#allocation8], 4
          %s239 = int_to_ptr.vmem [resolvable:$true] %s238
          %244 = dma.hbm_to_vmem [thread:$0]  %s4, 3072, %s239, [#allocation7], 64, 64, 4
        $region28: #{tpu_custom_call.1} parent=11 // pred_fallthru
          _
        // Predicated region
        $region29: #{tpu_custom_call.1} parent=11 // pred_check
          %p245 = pneg %p151
        $region30: #{tpu_custom_call.1} parent=11 // pred_check_branch
          %247 = sbr.rel (%p245) target = $region32
        $region31: #{tpu_custom_call.1} parent=11 // pred_region
          _
        $region32: #{tpu_custom_call.1} parent=11 // pred_fallthru
          _
        // Predicated region
        $region33: #{tpu_custom_call.1} parent=11 // pred_check
          %p248 = pneg %p172
        $region34: #{tpu_custom_call.1} parent=11 // pred_check_branch
          %250 = sbr.rel (%p248) target = $region36
        $region35: #{tpu_custom_call.1} parent=11 // pred_region
          _
        $region36: #{tpu_custom_call.1} parent=11 // pred_fallthru
          _
      $region12: #{tpu_custom_call.1} parent=5 // pred_fallthru
        _
      %p251 = scmp.lt.s32.totalorder %s20, 4
      // Predicated region
      $region37: #{tpu_custom_call.1} parent=5 // pred_check
        %p252 = pneg %p251
      $region38: #{tpu_custom_call.1} parent=5 // pred_check_branch
        %254 = sbr.rel (%p252) target = $region40
      $region39: #{tpu_custom_call.1} parent=5 // pred_region
        // Predicated region
        $region41: #{tpu_custom_call.1} parent=39 // pred_check
          %p255 = pneg %p40
        $region42: #{tpu_custom_call.1} parent=39 // pred_check_branch
          %257 = sbr.rel (%p255) target = $region44
        $region43: #{tpu_custom_call.1} parent=39 // pred_region
          %s258 = sand.u32 %s30, 1
          %s259 = scalar_lea.sflag [#allocation4], %s258
          %s260 = sand.u32 %s30, 1
          %s261 = smul.addr %s260, 128
          %s262 = scalar_lea.vmem [#allocation3], %s261
          %s263 = smul.u32 8, %s20
          %s265 = ssub.s32 2048, 2048
          %266 = vsyncadd %s259, %s265
          %s267 = smul.addr %s263, 2
          %s268 = smul.addr %s267, 128
          %s269 = scalar_lea.hbm %s0, %s268
          %s270 = sshll.u32 %s262, 4
          %s271 = int_to_ptr.vmem [resolvable:$true] %s270
          %276 = dma.hbm_to_vmem [thread:$0]  %s269, 2048, %s271, %s259, 128, 128, 8
        $region44: #{tpu_custom_call.1} parent=39 // pred_fallthru
          _
      $region40: #{tpu_custom_call.1} parent=5 // pred_fallthru
        _
      %p277 = scmp.le.s32.totalorder 1, %s20
      %p278 = scmp.lt.s32.totalorder %s20, 5
      %p279 = pnand %p277, %p278
      %p280 = pneg %p279
      // Predicated region
      $region45: #{tpu_custom_call.1} parent=5 // pred_check
        _
      $region46: #{tpu_custom_call.1} parent=5 // pred_check_branch
        %282 = sbr.rel (%p279) target = $region48
      $region47: #{tpu_custom_call.1} parent=5 // pred_region
        %s283 = ssub.s32 %s20, 1
        %s284 = sand.u32 %s33, 1
        %s285 = scalar_lea.sflag [#allocation4], %s284
        %s286 = sand.u32 %s33, 1
        %s287 = smul.addr %s286, 128
        %s288 = scalar_lea.vmem [#allocation3], %s287
        // Predicated region
        $region49: #{tpu_custom_call.1} parent=47 // pred_check
          %p289 = pneg %p46
        $region50: #{tpu_custom_call.1} parent=47 // pred_check_branch
          %291 = sbr.rel (%p289) target = $region52
        $region51: #{tpu_custom_call.1} parent=47 // pred_region
          %292 = dma.done %s285, 2048
        $region52: #{tpu_custom_call.1} parent=47 // pred_fallthru
          _
        // Predicated region
        $region53: #{tpu_custom_call.1} parent=47 // pred_check
          %p293 = pneg %p67
        $region54: #{tpu_custom_call.1} parent=47 // pred_check_branch
          %295 = sbr.rel (%p293) target = $region56
        $region55: #{tpu_custom_call.1} parent=47 // pred_region
          %296 = dma.done [#allocation7], 3072
        $region56: #{tpu_custom_call.1} parent=47 // pred_fallthru
          _
        // Predicated region
        $region57: #{tpu_custom_call.1} parent=47 // pred_check
          %p297 = pneg %p130
        $region58: #{tpu_custom_call.1} parent=47 // pred_check_branch
          %299 = sbr.rel (%p297) target = $region60
        $region59: #{tpu_custom_call.1} parent=47 // pred_region
          %300 = dma.done [#allocation7], 3072
        $region60: #{tpu_custom_call.1} parent=47 // pred_fallthru
          _
        %s301 = sand.u32 %s33, 1
        %s302 = scalar_lea.sflag [#allocation4], %s301
        %s303 = sand.u32 %s33, 1
        %s304 = smul.addr %s303, 128
        %s305 = scalar_lea.vmem [#allocation3], %s304
        %p306 = pneg %p46
        %p307 = pneg %p43
        %p308 = pneg %p67
        %p309 = pneg %p64
        %p310 = pneg %p88
        %p311 = pneg %p85
        %p312 = pneg %p109
        %p313 = pneg %p106
        %p314 = pneg %p130
        %p315 = pneg %p127
        %p316 = pneg %p151
        %p317 = pneg %p148
        %p318 = pneg %p172
        %p319 = pneg %p169
        %p320 = pneg %p198
        %p321 = pneg %p195
        %s322 = sand.u32 %s185, 1
        %s323 = scalar_lea.sflag [#allocation5], %s322
        %s324 = sand.u32 %s185, 1
        %s325 = smul.addr %s324, 128
        %s326 = scalar_lea.vmem [#allocation9], %s325
        %s327 = smul.u32 8, %s25
        %s328 = smul.u32 8, %s25
        %330 = vst [vmem:[#allocation2] sm:$0xff] 0
        %331 = vst [vmem:[#allocation2 + $0x8] sm:$0xff] 0
        %332 = vst [vmem:[#allocation2 + $0x10] sm:$0xff] 0
        %333 = vst [vmem:[#allocation2 + $0x18] sm:$0xff] 0
        %334 = vst [vmem:[#allocation2 + $0x20] sm:$0xff] 0
        %335 = vst [vmem:[#allocation2 + $0x28] sm:$0xff] 0
        %336 = vst [vmem:[#allocation2 + $0x30] sm:$0xff] 0
        %337 = vst [vmem:[#allocation2 + $0x38] sm:$0xff] 0
        %338 = vst [vmem:[#allocation2 + $0x40] sm:$0xff] 0
        %339 = vst [vmem:[#allocation2 + $0x48] sm:$0xff] 0
        %340 = vst [vmem:[#allocation2 + $0x50] sm:$0xff] 0
        %341 = vst [vmem:[#allocation2 + $0x58] sm:$0xff] 0
        %v342 = vld [vmem:[%s288] sm:$0xff]
        %v343 = vld [vmem:[%s288 + $0x8] sm:$0xff]
        %v344 = vpack.c.bf16 %v343, %v342
        %v346 = vshrl.u32 %v344, 16
        %v348 = vrot.slane %v346, 7
        %v349 = vshll.u32 %v344, 16
        %v351 = vor.u32 %v348, %v349
        %vm354 = vcmask 1047552
        %vm355 = vsmask.f32 7938
        %vm356 = vmand %vm354, %vm355
        %v357 = vld [vmem:[#allocation2] sm:$0xff]
        %v358 = vsel %vm356, %v351, %v357
        %359 = vst [vmem:[#allocation2] sm:$0xff] %v358
        %vm360 = vcmask 1040384
        %vm361 = vsmask.f32 256
        %vm362 = vmand %vm360, %vm361
        %v363 = vld [vmem:[#allocation2 + $0x8] sm:$0x1]
        %v364 = vsel %vm362, %v348, %v363
        %365 = vst [vmem:[#allocation2 + $0x8] sm:$0x1] %v364
        %s366 = scalar_lea.vmem %s288, 16 [#allocation3]
        %v367 = vld [vmem:[%s366] sm:$0xff]
        %v368 = vld [vmem:[%s366 + $0x8] sm:$0xff]
        %v369 = vpack.c.bf16 %v368, %v367
        %v371 = vshrl.u32 %v369, 16
        %v373 = vrot.slane %v371, 3
        %v374 = vshll.u32 %v369, 16
        %v376 = vrot.slane %v374, 4
        %v377 = vor.u32 %v373, %v376
        %vm379 = vcmask 1047556
        %vm380 = vsmask.f32 7954
        %vm381 = vmand %vm379, %vm380
        %v382 = vld [vmem:[#allocation2 + $0x8] sm:$0xf0]
        %v383 = vsel %vm381, %v377, %v382
        %384 = vst [vmem:[#allocation2 + $0x8] sm:$0xf0] %v383
        %vm385 = vcmask 1044480
        %vm386 = vsmask.f32 4352
        %vm387 = vmand %vm385, %vm386
        %v388 = vld [vmem:[#allocation2 + $0x10] sm:$0x1f]
        %v389 = vsel %vm387, %v377, %v388
        %390 = vst [vmem:[#allocation2 + $0x10] sm:$0x1f] %v389
        %s391 = scalar_lea.vmem %s288, 32 [#allocation3]
        %v392 = vld [vmem:[%s391] sm:$0xff]
        %v393 = vld [vmem:[%s391 + $0x8] sm:$0xff]
        %v394 = vpack.c.bf16 %v393, %v392
        %v396 = vshrl.u32 %v394, 16
        %v398 = vrot.slane %v396, 7
        %v399 = vshll.u32 %v394, 16
        %v401 = vor.u32 %v398, %v399
        %v404 = vld [vmem:[#allocation2 + $0x18] sm:$0xff]
        %v405 = vsel %vm356, %v401, %v404
        %406 = vst [vmem:[#allocation2 + $0x18] sm:$0xff] %v405
        %v407 = vld [vmem:[#allocation2 + $0x20] sm:$0x1]
        %v408 = vsel %vm362, %v398, %v407
        %409 = vst [vmem:[#allocation2 + $0x20] sm:$0x1] %v408
        %s410 = scalar_lea.vmem %s288, 48 [#allocation3]
        %v411 = vld [vmem:[%s410] sm:$0xff]
        %v412 = vld [vmem:[%s410 + $0x8] sm:$0xff]
        %v413 = vpack.c.bf16 %v412, %v411
        %v415 = vshrl.u32 %v413, 16
        %v417 = vrot.slane %v415, 3
        %v418 = vshll.u32 %v413, 16
        %v420 = vrot.slane %v418, 4
        %v421 = vor.u32 %v417, %v420
        %v423 = vld [vmem:[#allocation2 + $0x20] sm:$0xf0]
        %v424 = vsel %vm381, %v421, %v423
        %425 = vst [vmem:[#allocation2 + $0x20] sm:$0xf0] %v424
        %v426 = vld [vmem:[#allocation2 + $0x28] sm:$0x1f]
        %v427 = vsel %vm387, %v421, %v426
        %428 = vst [vmem:[#allocation2 + $0x28] sm:$0x1f] %v427
        %s429 = scalar_lea.vmem %s288, 64 [#allocation3]
        %v430 = vld [vmem:[%s429] sm:$0xff]
        %v431 = vld [vmem:[%s429 + $0x8] sm:$0xff]
        %v432 = vpack.c.bf16 %v431, %v430
        %v434 = vshrl.u32 %v432, 16
        %v436 = vrot.slane %v434, 7
        %v437 = vshll.u32 %v432, 16
        %v439 = vor.u32 %v436, %v437
        %v442 = vld [vmem:[#allocation2 + $0x30] sm:$0xff]
        %v443 = vsel %vm356, %v439, %v442
        %444 = vst [vmem:[#allocation2 + $0x30] sm:$0xff] %v443
        %v445 = vld [vmem:[#allocation2 + $0x38] sm:$0x1]
        %v446 = vsel %vm362, %v436, %v445
        %447 = vst [vmem:[#allocation2 + $0x38] sm:$0x1] %v446
        %s448 = scalar_lea.vmem %s288, 80 [#allocation3]
        %v449 = vld [vmem:[%s448] sm:$0xff]
        %v450 = vld [vmem:[%s448 + $0x8] sm:$0xff]
        %v451 = vpack.c.bf16 %v450, %v449
        %v453 = vshrl.u32 %v451, 16
        %v455 = vrot.slane %v453, 3
        %v456 = vshll.u32 %v451, 16
        %v458 = vrot.slane %v456, 4
        %v459 = vor.u32 %v455, %v458
        %v461 = vld [vmem:[#allocation2 + $0x38] sm:$0xf0]
        %v462 = vsel %vm381, %v459, %v461
        %463 = vst [vmem:[#allocation2 + $0x38] sm:$0xf0] %v462
        %v464 = vld [vmem:[#allocation2 + $0x40] sm:$0x1f]
        %v465 = vsel %vm387, %v459, %v464
        %466 = vst [vmem:[#allocation2 + $0x40] sm:$0x1f] %v465
        %s467 = scalar_lea.vmem %s288, 96 [#allocation3]
        %v468 = vld [vmem:[%s467] sm:$0xff]
        %v469 = vld [vmem:[%s467 + $0x8] sm:$0xff]
        %v470 = vpack.c.bf16 %v469, %v468
        %v472 = vshrl.u32 %v470, 16
        %v474 = vrot.slane %v472, 7
        %v475 = vshll.u32 %v470, 16
        %v477 = vor.u32 %v474, %v475
        %v480 = vld [vmem:[#allocation2 + $0x48] sm:$0xff]
        %v481 = vsel %vm356, %v477, %v480
        %482 = vst [vmem:[#allocation2 + $0x48] sm:$0xff] %v481
        %v483 = vld [vmem:[#allocation2 + $0x50] sm:$0x1]
        %v484 = vsel %vm362, %v474, %v483
        %485 = vst [vmem:[#allocation2 + $0x50] sm:$0x1] %v484
        %s486 = scalar_lea.vmem %s288, 112 [#allocation3]
        %v487 = vld [vmem:[%s486] sm:$0xff]
        %v488 = vld [vmem:[%s486 + $0x8] sm:$0xff]
        %v489 = vpack.c.bf16 %v488, %v487
        %v491 = vshrl.u32 %v489, 16
        %v493 = vrot.slane %v491, 3
        %v494 = vshll.u32 %v489, 16
        %v496 = vrot.slane %v494, 4
        %v497 = vor.u32 %v493, %v496
        %v499 = vld [vmem:[#allocation2 + $0x50] sm:$0xf0]
        %v500 = vsel %vm381, %v497, %v499
        %501 = vst [vmem:[#allocation2 + $0x50] sm:$0xf0] %v500
        %v502 = vld [vmem:[#allocation2 + $0x58] sm:$0x1f]
        %v503 = vsel %vm387, %v497, %v502
        %504 = vst [vmem:[#allocation2 + $0x58] sm:$0x1f] %v503
        %v505 = vld [vmem:[#allocation2] sm:$0xff]
        %v506 = vld [vmem:[#allocation2 + $0x8] sm:$0xff]
        %v507 = vld [vmem:[#allocation2 + $0x10] sm:$0xff]
        %v508 = vld [vmem:[#allocation2 + $0x18] sm:$0xff]
        %v509 = vld [vmem:[#allocation2 + $0x20] sm:$0xff]
        %v510 = vld [vmem:[#allocation2 + $0x28] sm:$0xff]
        %v511 = vld [vmem:[#allocation2 + $0x30] sm:$0xff]
        %v512 = vld [vmem:[#allocation2 + $0x38] sm:$0xff]
        %v513 = vld [vmem:[#allocation2 + $0x40] sm:$0xff]
        %v514 = vld [vmem:[#allocation2 + $0x48] sm:$0xff]
        %v515 = vld [vmem:[#allocation2 + $0x50] sm:$0xff]
        %v516 = vld [vmem:[#allocation2 + $0x58] sm:$0x7f]
        %v517 = vld [vmem:[#allocation6] sm:$0xf]
        %v518 = vld [vmem:[#allocation6 + $0x4] sm:$0xf]
        %v519 = vld [vmem:[#allocation6 + $0x8] sm:$0xf]
        %v520 = vld [vmem:[#allocation6 + $0xc] sm:$0xf]
        %v521 = vld [vmem:[#allocation6 + $0x10] sm:$0xf]
        %v522 = vld [vmem:[#allocation6 + $0x14] sm:$0xf]
        %v523 = vld [vmem:[#allocation6 + $0x18] sm:$0xf]
        %v524 = vld [vmem:[#allocation6 + $0x1c] sm:$0xf]
        %v525 = vld [vmem:[#allocation6 + $0x20] sm:$0xf]
        %v526 = vld [vmem:[#allocation6 + $0x24] sm:$0xf]
        %v527 = vld [vmem:[#allocation6 + $0x28] sm:$0xf]
        %v528 = vld [vmem:[#allocation6 + $0x2c] sm:$0xf]
        %v529 = vld [vmem:[#allocation6 + $0x30] sm:$0xf]
        %v530 = vld [vmem:[#allocation6 + $0x34] sm:$0xf]
        %v531 = vld [vmem:[#allocation6 + $0x38] sm:$0xf]
        %v532 = vld [vmem:[#allocation6 + $0x3c] sm:$0xf]
        %v533 = vld [vmem:[#allocation2 + $0x58] sm:$0xff]
        %s534 = scalar_lea.vmem [#allocation6], 64
        %v535 = vld [vmem:[%s534] sm:$0xf]
        %v536 = vld [vmem:[%s534 + $0x4] sm:$0xf]
        %v537 = vld [vmem:[%s534 + $0x8] sm:$0xf]
        %v538 = vld [vmem:[%s534 + $0xc] sm:$0xf]
        %v539 = vld [vmem:[%s534 + $0x10] sm:$0xf]
        %v540 = vld [vmem:[%s534 + $0x14] sm:$0xf]
        %v541 = vld [vmem:[%s534 + $0x18] sm:$0xf]
        %v542 = vld [vmem:[%s534 + $0x1c] sm:$0xf]
        %v543 = vld [vmem:[%s534 + $0x20] sm:$0xf]
        %v544 = vld [vmem:[%s534 + $0x24] sm:$0xf]
        %v545 = vld [vmem:[%s534 + $0x28] sm:$0xf]
        %v546 = vld [vmem:[%s534 + $0x2c] sm:$0xf]
        %v547 = vld [vmem:[%s534 + $0x30] sm:$0xf]
        %v548 = vld [vmem:[%s534 + $0x34] sm:$0xf]
        %v549 = vld [vmem:[%s534 + $0x38] sm:$0xf]
        %v550 = vld [vmem:[%s534 + $0x3c] sm:$0xf]
        %vm551 = vsmask.f32 7424
        %v553 = vshrl.u32 %v505, 16
        %v555 = vshll.u32 %v505, 16
        %v557 = vrot.slane %v555, 1
        %v558 = vor.u32 %v553, %v557
        %v560 = vshll.u32 %v506, 16
        %v562 = vrot.slane %v560, 1
        %v563 = vsel %vm551, %v558, %v562
        %v564 = vshrl.u32 %v506, 16
        %v566 = vor.u32 %v564, %v562
        %v568 = vshll.u32 %v507, 16
        %v570 = vrot.slane %v568, 1
        %v571 = vsel %vm551, %v566, %v570
        %v572 = vshrl.u32 %v507, 16
        %v574 = vor.u32 %v572, %v570
        %v576 = vshll.u32 %v508, 16
        %v578 = vrot.slane %v576, 1
        %v579 = vsel %vm551, %v574, %v578
        %v580 = vshrl.u32 %v508, 16
        %v582 = vor.u32 %v580, %v578
        %v584 = vshll.u32 %v509, 16
        %v586 = vrot.slane %v584, 1
        %v587 = vsel %vm551, %v582, %v586
        %v588 = vshrl.u32 %v509, 16
        %v590 = vor.u32 %v588, %v586
        %v592 = vshll.u32 %v510, 16
        %v594 = vrot.slane %v592, 1
        %v595 = vsel %vm551, %v590, %v594
        %v596 = vshrl.u32 %v510, 16
        %v598 = vor.u32 %v596, %v594
        %v600 = vshll.u32 %v511, 16
        %v602 = vrot.slane %v600, 1
        %v603 = vsel %vm551, %v598, %v602
        %v604 = vshrl.u32 %v511, 16
        %v606 = vor.u32 %v604, %v602
        %v608 = vshll.u32 %v512, 16
        %v610 = vrot.slane %v608, 1
        %v611 = vsel %vm551, %v606, %v610
        %v612 = vshrl.u32 %v512, 16
        %v614 = vor.u32 %v612, %v610
        %v616 = vshll.u32 %v513, 16
        %v618 = vrot.slane %v616, 1
        %v619 = vsel %vm551, %v614, %v618
        %v620 = vshrl.u32 %v513, 16
        %v622 = vor.u32 %v620, %v618
        %v624 = vshll.u32 %v514, 16
        %v626 = vrot.slane %v624, 1
        %v627 = vsel %vm551, %v622, %v626
        %v628 = vshrl.u32 %v514, 16
        %v630 = vor.u32 %v628, %v626
        %v632 = vshll.u32 %v515, 16
        %v634 = vrot.slane %v632, 1
        %v635 = vsel %vm551, %v630, %v634
        %v636 = vshrl.u32 %v515, 16
        %v638 = vor.u32 %v636, %v634
        %v640 = vshll.u32 %v533, 16
        %v642 = vrot.slane %v640, 1
        %v643 = vsel %vm551, %v638, %v642
        %v644 = vshrl.u32 %v533, 16
        %v646 = vor.u32 %v644, %v642
        %v675 = vunpack.c.l.b16 %v535
        %v676 = vunpack.c.l.b16 %v536
        %v677 = vunpack.c.l.b16 %v537
        %v678 = vunpack.c.l.b16 %v538
        %v679 = vunpack.c.l.b16 %v539
        %v680 = vunpack.c.l.b16 %v540
        %v681 = vunpack.c.l.b16 %v541
        %v682 = vunpack.c.l.b16 %v542
        %v683 = vunpack.c.l.b16 %v543
        %v684 = vunpack.c.l.b16 %v544
        %v685 = vunpack.c.l.b16 %v545
        %v686 = vunpack.c.l.b16 %v546
        %v687 = vunpack.c.l.b16 %v547
        %v688 = vunpack.c.l.b16 %v548
        %v689 = vunpack.c.l.b16 %v549
        %v690 = vunpack.c.l.b16 %v550
        %v691 = vpack.c.b16 %v676, %v675
        %v692 = vpack.c.b16 %v678, %v677
        %v693 = vpack.c.b16 %v680, %v679
        %v694 = vpack.c.b16 %v682, %v681
        %v695 = vpack.c.b16 %v684, %v683
        %v696 = vpack.c.b16 %v686, %v685
        %v697 = vpack.c.b16 %v688, %v687
        %v698 = vpack.c.b16 %v690, %v689
        %707 = vmatprep.subr.bf16.mxu0 0
        %708 = vmatpush1.bf16.msra.mxu0 %v691
        %709 = vmatprep.subr.bf16.mxu0 0
        %710 = vmatpush1.bf16.msra.mxu0 %v692
        %711 = vmatprep.subr.bf16.mxu0 0
        %712 = vmatpush1.bf16.msra.mxu0 %v693
        %713 = vmatprep.subr.bf16.mxu0 0
        %714 = vmatpush1.bf16.msra.mxu0 %v694
        %715 = vmatprep.subr.bf16.mxu0 0
        %716 = vmatpush1.bf16.msra.mxu0 %v695
        %717 = vmatprep.subr.bf16.mxu0 0
        %718 = vmatpush1.bf16.msra.mxu0 %v696
        %719 = vmatprep.subr.bf16.mxu0 0
        %720 = vmatpush1.bf16.msra.mxu0 %v697
        %721 = vmatprep.subr.bf16.mxu0 0
        %722 = vmatpush1.bf16.msra.mxu0 %v698
        %723 = vmatprep.subr.bf16.mxu0 0
        %724 = vmatpush1.bf16.msra.mxu0 0
        %725 = vmatprep.subr.bf16.mxu0 0
        %726 = vmatpush1.bf16.msra.mxu0 0
        %727 = vmatprep.subr.bf16.mxu0 0
        %728 = vmatpush1.bf16.msra.mxu0 0
        %729 = vmatprep.subr.bf16.mxu0 0
        %730 = vmatpush1.bf16.msra.mxu0 0
        %731 = vmatprep.subr.bf16.mxu0 0
        %732 = vmatpush1.bf16.msra.mxu0 0
        %733 = vmatprep.subr.bf16.mxu0 0
        %734 = vmatpush1.bf16.msra.mxu0 0
        %735 = vmatprep.subr.bf16.mxu0 0
        %736 = vmatpush1.bf16.msra.mxu0 0
        %737 = vmatprep.subr.bf16.mxu0 0
        %738 = vmatpush1.bf16.msra.mxu0 0
        %739 = vmatprep.mubr.bf16.mxu0 0
        %740 = vmatmul.mubr.bf16.gmra.mrb[0].mxu0 %v563
        %v741 = vpop.f32.mrb[0].mxu0
        %v742 = vadd.f32 0.0, %v741
        %v743 = vpop.f32.mrb[0].mxu0
        %v744 = vpop.f32.mrb[0].mxu0
        %v745 = vadd.f32 0.0, %v744
        %v746 = vpop.f32.mrb[0].mxu0
        %747 = vmatprep.mubr.bf16.mxu0 0
        %748 = vmatmul.mubr.bf16.gmra.mrb[0].mxu0 %v571
        %v749 = vpop.f32.mrb[0].mxu0
        %v750 = vpop.f32.mrb[0].mxu0
        %v751 = vpop.f32.mrb[0].mxu0
        %v752 = vadd.f32 0.0, %v751
        %v753 = vpop.f32.mrb[0].mxu0
        %754 = vmatprep.mubr.bf16.mxu0 0
        %755 = vmatmul.mubr.bf16.gmra.mrb[0].mxu0 %v579
        %v756 = vpop.f32.mrb[0].mxu0
        %v757 = vadd.f32 0.0, %v756
        %v758 = vpop.f32.mrb[0].mxu0
        %v759 = vpop.f32.mrb[0].mxu0
        %v760 = vpop.f32.mrb[0].mxu0
        %761 = vmatprep.mubr.bf16.mxu0 0
        %762 = vmatmul.mubr.bf16.gmra.mrb[0].mxu0 %v587
        %v763 = vpop.f32.mrb[0].mxu0
        %v764 = vadd.f32 0.0, %v763
        %v765 = vpop.f32.mrb[0].mxu0
        %v766 = vpop.f32.mrb[0].mxu0
        %v767 = vadd.f32 0.0, %v766
        %v768 = vpop.f32.mrb[0].mxu0
        %769 = vmatprep.mubr.bf16.mxu0 0
        %770 = vmatmul.mubr.bf16.gmra.mrb[0].mxu0 %v595
        %v771 = vpop.f32.mrb[0].mxu0
        %v772 = vpop.f32.mrb[0].mxu0
        %v773 = vpop.f32.mrb[0].mxu0
        %v774 = vadd.f32 0.0, %v773
        %v775 = vpop.f32.mrb[0].mxu0
        %776 = vmatprep.mubr.bf16.mxu0 0
        %777 = vmatmul.mubr.bf16.gmra.mrb[0].mxu0 %v603
        %v778 = vpop.f32.mrb[0].mxu0
        %v779 = vadd.f32 0.0, %v778
        %v780 = vpop.f32.mrb[0].mxu0
        %v781 = vpop.f32.mrb[0].mxu0
        %v782 = vpop.f32.mrb[0].mxu0
        %783 = vmatprep.mubr.bf16.mxu0 0
        %784 = vmatmul.mubr.bf16.gmra.mrb[0].mxu0 %v611
        %v785 = vpop.f32.mrb[0].mxu0
        %v786 = vadd.f32 0.0, %v785
        %v787 = vpop.f32.mrb[0].mxu0
        %v788 = vpop.f32.mrb[0].mxu0
        %v789 = vadd.f32 0.0, %v788
        %v790 = vpop.f32.mrb[0].mxu0
        %791 = vmatprep.mubr.bf16.mxu0 0
        %792 = vmatmul.mubr.bf16.gmra.mrb[0].mxu0 %v619
        %v793 = vpop.f32.mrb[0].mxu0
        %v794 = vpop.f32.mrb[0].mxu0
        %v795 = vpop.f32.mrb[0].mxu0
        %v796 = vadd.f32 0.0, %v795
        %v797 = vpop.f32.mrb[0].mxu0
        %798 = vmatprep.mubr.bf16.mxu0 0
        %799 = vmatmul.mubr.bf16.gmra.mrb[0].mxu0 %v627
        %v800 = vpop.f32.mrb[0].mxu0
        %v801 = vadd.f32 0.0, %v800
        %v802 = vpop.f32.mrb[0].mxu0
        %v803 = vpop.f32.mrb[0].mxu0
        %v804 = vpop.f32.mrb[0].mxu0
        %805 = vmatprep.mubr.bf16.mxu0 0
        %806 = vmatmul.mubr.bf16.gmra.mrb[0].mxu0 %v635
        %v807 = vpop.f32.mrb[0].mxu0
        %v808 = vadd.f32 0.0, %v807
        %v809 = vpop.f32.mrb[0].mxu0
        %v810 = vpop.f32.mrb[0].mxu0
        %v811 = vadd.f32 0.0, %v810
        %v812 = vpop.f32.mrb[0].mxu0
        %813 = vmatprep.mubr.bf16.mxu0 0
        %814 = vmatmul.mubr.bf16.gmra.mrb[0].mxu0 %v643
        %v815 = vpop.f32.mrb[0].mxu0
        %v816 = vpop.f32.mrb[0].mxu0
        %v817 = vpop.f32.mrb[0].mxu0
        %v818 = vadd.f32 0.0, %v817
        %v819 = vpop.f32.mrb[0].mxu0
        %820 = vmatprep.mubr.bf16.mxu0 0
        %821 = vmatmul.mubr.bf16.gmra.mrb[0].mxu0 %v646
        %v822 = vpop.f32.mrb[0].mxu0
        %v823 = vadd.f32 0.0, %v822
        %v824 = vpop.f32.mrb[0].mxu0
        %v825 = vpop.f32.mrb[0].mxu0
        %v826 = vpop.f32.mrb[0].mxu0
        %827 = vdwg.mxu0
        %v844 = vunpack.c.l.b16 %v517
        %v845 = vunpack.c.l.b16 %v518
        %v846 = vunpack.c.l.b16 %v519
        %v847 = vunpack.c.l.b16 %v520
        %v848 = vunpack.c.l.b16 %v521
        %v849 = vunpack.c.l.b16 %v522
        %v850 = vunpack.c.l.b16 %v523
        %v851 = vunpack.c.l.b16 %v524
        %v852 = vunpack.c.l.b16 %v525
        %v853 = vunpack.c.l.b16 %v526
        %v854 = vunpack.c.l.b16 %v527
        %v855 = vunpack.c.l.b16 %v528
        %v856 = vunpack.c.l.b16 %v529
        %v857 = vunpack.c.l.b16 %v530
        %v858 = vunpack.c.l.b16 %v531
        %v859 = vunpack.c.l.b16 %v532
        %v860 = vpack.c.b16 %v845, %v844
        %v861 = vpack.c.b16 %v847, %v846
        %v862 = vpack.c.b16 %v849, %v848
        %v863 = vpack.c.b16 %v851, %v850
        %v864 = vpack.c.b16 %v853, %v852
        %v865 = vpack.c.b16 %v855, %v854
        %v866 = vpack.c.b16 %v857, %v856
        %v867 = vpack.c.b16 %v859, %v858
        %876 = vmatprep.subr.bf16.mxu0 0
        %877 = vmatpush1.bf16.msra.mxu0 %v860
        %878 = vmatprep.subr.bf16.mxu0 0
        %879 = vmatpush1.bf16.msra.mxu0 %v861
        %880 = vmatprep.subr.bf16.mxu0 0
        %881 = vmatpush1.bf16.msra.mxu0 %v862
        %882 = vmatprep.subr.bf16.mxu0 0
        %883 = vmatpush1.bf16.msra.mxu0 %v863
        %884 = vmatprep.subr.bf16.mxu0 0
        %885 = vmatpush1.bf16.msra.mxu0 %v864
        %886 = vmatprep.subr.bf16.mxu0 0
        %887 = vmatpush1.bf16.msra.mxu0 %v865
        %888 = vmatprep.subr.bf16.mxu0 0
        %889 = vmatpush1.bf16.msra.mxu0 %v866
        %890 = vmatprep.subr.bf16.mxu0 0
        %891 = vmatpush1.bf16.msra.mxu0 %v867
        %892 = vmatprep.subr.bf16.mxu0 0
        %893 = vmatpush1.bf16.msra.mxu0 0
        %894 = vmatprep.subr.bf16.mxu0 0
        %895 = vmatpush1.bf16.msra.mxu0 0
        %896 = vmatprep.subr.bf16.mxu0 0
        %897 = vmatpush1.bf16.msra.mxu0 0
        %898 = vmatprep.subr.bf16.mxu0 0
        %899 = vmatpush1.bf16.msra.mxu0 0
        %900 = vmatprep.subr.bf16.mxu0 0
        %901 = vmatpush1.bf16.msra.mxu0 0
        %902 = vmatprep.subr.bf16.mxu0 0
        %903 = vmatpush1.bf16.msra.mxu0 0
        %904 = vmatprep.subr.bf16.mxu0 0
        %905 = vmatpush1.bf16.msra.mxu0 0
        %906 = vmatprep.subr.bf16.mxu0 0
        %907 = vmatpush1.bf16.msra.mxu0 0
        %908 = vmatprep.mubr.bf16.mxu0 0
        %909 = vmatmul.mubr.bf16.gmra.mrb[0].mxu0 %v505
        %v910 = vpop.f32.mrb[0].mxu0
        %v911 = vadd.f32 %v742, %v910
        %v912 = vpop.f32.mrb[0].mxu0
        %v913 = vpop.f32.mrb[0].mxu0
        %v914 = vadd.f32 %v745, %v913
        %v915 = vpop.f32.mrb[0].mxu0
        %916 = vmatprep.mubr.bf16.mxu0 0
        %917 = vmatmul.mubr.bf16.gmra.mrb[0].mxu0 %v506
        %v918 = vpop.f32.mrb[0].mxu0
        %v919 = vpop.f32.mrb[0].mxu0
        %v920 = vpop.f32.mrb[0].mxu0
        %v921 = vadd.f32 %v752, %v920
        %v922 = vpop.f32.mrb[0].mxu0
        %923 = vmatprep.mubr.bf16.mxu0 0
        %924 = vmatmul.mubr.bf16.gmra.mrb[0].mxu0 %v507
        %v925 = vpop.f32.mrb[0].mxu0
        %v926 = vadd.f32 %v757, %v925
        %v927 = vpop.f32.mrb[0].mxu0
        %v928 = vpop.f32.mrb[0].mxu0
        %v929 = vpop.f32.mrb[0].mxu0
        %930 = vmatprep.mubr.bf16.mxu0 0
        %931 = vmatmul.mubr.bf16.gmra.mrb[0].mxu0 %v508
        %v932 = vpop.f32.mrb[0].mxu0
        %v933 = vadd.f32 %v764, %v932
        %v934 = vpop.f32.mrb[0].mxu0
        %v935 = vpop.f32.mrb[0].mxu0
        %v936 = vadd.f32 %v767, %v935
        %v937 = vpop.f32.mrb[0].mxu0
        %938 = vmatprep.mubr.bf16.mxu0 0
        %939 = vmatmul.mubr.bf16.gmra.mrb[0].mxu0 %v509
        %v940 = vpop.f32.mrb[0].mxu0
        %v941 = vpop.f32.mrb[0].mxu0
        %v942 = vpop.f32.mrb[0].mxu0
        %v943 = vadd.f32 %v774, %v942
        %v944 = vpop.f32.mrb[0].mxu0
        %945 = vmatprep.mubr.bf16.mxu0 0
        %946 = vmatmul.mubr.bf16.gmra.mrb[0].mxu0 %v510
        %v947 = vpop.f32.mrb[0].mxu0
        %v948 = vadd.f32 %v779, %v947
        %v949 = vpop.f32.mrb[0].mxu0
        %v950 = vpop.f32.mrb[0].mxu0
        %v951 = vpop.f32.mrb[0].mxu0
        %952 = vmatprep.mubr.bf16.mxu0 0
        %953 = vmatmul.mubr.bf16.gmra.mrb[0].mxu0 %v511
        %v954 = vpop.f32.mrb[0].mxu0
        %v955 = vadd.f32 %v786, %v954
        %v956 = vpop.f32.mrb[0].mxu0
        %v957 = vpop.f32.mrb[0].mxu0
        %v958 = vadd.f32 %v789, %v957
        %v959 = vpop.f32.mrb[0].mxu0
        %960 = vmatprep.mubr.bf16.mxu0 0
        %961 = vmatmul.mubr.bf16.gmra.mrb[0].mxu0 %v512
        %v962 = vpop.f32.mrb[0].mxu0
        %v963 = vpop.f32.mrb[0].mxu0
        %v964 = vpop.f32.mrb[0].mxu0
        %v965 = vadd.f32 %v796, %v964
        %v966 = vpop.f32.mrb[0].mxu0
        %967 = vmatprep.mubr.bf16.mxu0 0
        %968 = vmatmul.mubr.bf16.gmra.mrb[0].mxu0 %v513
        %v969 = vpop.f32.mrb[0].mxu0
        %v970 = vadd.f32 %v801, %v969
        %v971 = vpop.f32.mrb[0].mxu0
        %v972 = vpop.f32.mrb[0].mxu0
        %v973 = vpop.f32.mrb[0].mxu0
        %974 = vmatprep.mubr.bf16.mxu0 0
        %975 = vmatmul.mubr.bf16.gmra.mrb[0].mxu0 %v514
        %v976 = vpop.f32.mrb[0].mxu0
        %v977 = vadd.f32 %v808, %v976
        %v978 = vpop.f32.mrb[0].mxu0
        %v979 = vpop.f32.mrb[0].mxu0
        %v980 = vadd.f32 %v811, %v979
        %v981 = vpop.f32.mrb[0].mxu0
        %982 = vmatprep.mubr.bf16.mxu0 0
        %983 = vmatmul.mubr.bf16.gmra.mrb[0].mxu0 %v515
        %v984 = vpop.f32.mrb[0].mxu0
        %v985 = vpop.f32.mrb[0].mxu0
        %v986 = vpop.f32.mrb[0].mxu0
        %v987 = vadd.f32 %v818, %v986
        %v988 = vpop.f32.mrb[0].mxu0
        %989 = vmatprep.mubr.bf16.mxu0 0
        %990 = vmatmul.mubr.bf16.gmra.mrb[0].mxu0 %v516
        %v991 = vpop.f32.mrb[0].mxu0
        %v992 = vadd.f32 %v823, %v991
        %v993 = vpop.f32.mrb[0].mxu0
        %v994 = vpop.f32.mrb[0].mxu0
        %v995 = vpop.f32.mrb[0].mxu0
        %996 = vdwg.mxu0
        %v997 = vld [vmem:[#allocation2] sm:$0xfe]
        %s998 = scalar_lea.vmem [#allocation6], 128
        %v999 = vld [vmem:[%s998] sm:$0xf]
        %v1000 = vld [vmem:[%s998 + $0x4] sm:$0xf]
        %v1001 = vld [vmem:[%s998 + $0x8] sm:$0xf]
        %v1002 = vld [vmem:[%s998 + $0xc] sm:$0xf]
        %v1003 = vld [vmem:[%s998 + $0x10] sm:$0xf]
        %v1004 = vld [vmem:[%s998 + $0x14] sm:$0xf]
        %v1005 = vld [vmem:[%s998 + $0x18] sm:$0xf]
        %v1006 = vld [vmem:[%s998 + $0x1c] sm:$0xf]
        %v1007 = vld [vmem:[%s998 + $0x20] sm:$0xf]
        %v1008 = vld [vmem:[%s998 + $0x24] sm:$0xf]
        %v1009 = vld [vmem:[%s998 + $0x28] sm:$0xf]
        %v1010 = vld [vmem:[%s998 + $0x2c] sm:$0xf]
        %v1011 = vld [vmem:[%s998 + $0x30] sm:$0xf]
        %v1012 = vld [vmem:[%s998 + $0x34] sm:$0xf]
        %v1013 = vld [vmem:[%s998 + $0x38] sm:$0xf]
        %v1014 = vld [vmem:[%s998 + $0x3c] sm:$0xf]
        %vm1027 = vcmask 1046528
        %v1028 = vrot.slane %v997, 1
        %v1029 = vrot.slane %v506, 1
        %v1030 = vsel %vm1027, %v1028, %v1029
        %v1031 = vrot.slane %v507, 1
        %v1032 = vsel %vm1027, %v1029, %v1031
        %v1033 = vrot.slane %v508, 1
        %v1034 = vsel %vm1027, %v1031, %v1033
        %v1035 = vrot.slane %v509, 1
        %v1036 = vsel %vm1027, %v1033, %v1035
        %v1037 = vrot.slane %v510, 1
        %v1038 = vsel %vm1027, %v1035, %v1037
        %v1039 = vrot.slane %v511, 1
        %v1040 = vsel %vm1027, %v1037, %v1039
        %v1041 = vrot.slane %v512, 1
        %v1042 = vsel %vm1027, %v1039, %v1041
        %v1043 = vrot.slane %v513, 1
        %v1044 = vsel %vm1027, %v1041, %v1043
        %v1045 = vrot.slane %v514, 1
        %v1046 = vsel %vm1027, %v1043, %v1045
        %v1047 = vrot.slane %v515, 1
        %v1048 = vsel %vm1027, %v1045, %v1047
        %v1049 = vrot.slane %v533, 1
        %v1050 = vsel %vm1027, %v1047, %v1049
        %v1079 = vunpack.c.l.b16 %v999
        %v1080 = vunpack.c.l.b16 %v1000
        %v1081 = vunpack.c.l.b16 %v1001
        %v1082 = vunpack.c.l.b16 %v1002
        %v1083 = vunpack.c.l.b16 %v1003
        %v1084 = vunpack.c.l.b16 %v1004
        %v1085 = vunpack.c.l.b16 %v1005
        %v1086 = vunpack.c.l.b16 %v1006
        %v1087 = vunpack.c.l.b16 %v1007
        %v1088 = vunpack.c.l.b16 %v1008
        %v1089 = vunpack.c.l.b16 %v1009
        %v1090 = vunpack.c.l.b16 %v1010
        %v1091 = vunpack.c.l.b16 %v1011
        %v1092 = vunpack.c.l.b16 %v1012
        %v1093 = vunpack.c.l.b16 %v1013
        %v1094 = vunpack.c.l.b16 %v1014
        %v1095 = vpack.c.b16 %v1080, %v1079
        %v1096 = vpack.c.b16 %v1082, %v1081
        %v1097 = vpack.c.b16 %v1084, %v1083
        %v1098 = vpack.c.b16 %v1086, %v1085
        %v1099 = vpack.c.b16 %v1088, %v1087
        %v1100 = vpack.c.b16 %v1090, %v1089
        %v1101 = vpack.c.b16 %v1092, %v1091
        %v1102 = vpack.c.b16 %v1094, %v1093
        %1111 = vmatprep.subr.bf16.mxu0 0
        %1112 = vmatpush1.bf16.msra.mxu0 %v1095
        %1113 = vmatprep.subr.bf16.mxu0 0
        %1114 = vmatpush1.bf16.msra.mxu0 %v1096
        %1115 = vmatprep.subr.bf16.mxu0 0
        %1116 = vmatpush1.bf16.msra.mxu0 %v1097
        %1117 = vmatprep.subr.bf16.mxu0 0
        %1118 = vmatpush1.bf16.msra.mxu0 %v1098
        %1119 = vmatprep.subr.bf16.mxu0 0
        %1120 = vmatpush1.bf16.msra.mxu0 %v1099
        %1121 = vmatprep.subr.bf16.mxu0 0
        %1122 = vmatpush1.bf16.msra.mxu0 %v1100
        %1123 = vmatprep.subr.bf16.mxu0 0
        %1124 = vmatpush1.bf16.msra.mxu0 %v1101
        %1125 = vmatprep.subr.bf16.mxu0 0
        %1126 = vmatpush1.bf16.msra.mxu0 %v1102
        %1127 = vmatprep.subr.bf16.mxu0 0
        %1128 = vmatpush1.bf16.msra.mxu0 0
        %1129 = vmatprep.subr.bf16.mxu0 0
        %1130 = vmatpush1.bf16.msra.mxu0 0
        %1131 = vmatprep.subr.bf16.mxu0 0
        %1132 = vmatpush1.bf16.msra.mxu0 0
        %1133 = vmatprep.subr.bf16.mxu0 0
        %1134 = vmatpush1.bf16.msra.mxu0 0
        %1135 = vmatprep.subr.bf16.mxu0 0
        %1136 = vmatpush1.bf16.msra.mxu0 0
        %1137 = vmatprep.subr.bf16.mxu0 0
        %1138 = vmatpush1.bf16.msra.mxu0 0
        %1139 = vmatprep.subr.bf16.mxu0 0
        %1140 = vmatpush1.bf16.msra.mxu0 0
        %1141 = vmatprep.subr.bf16.mxu0 0
        %1142 = vmatpush1.bf16.msra.mxu0 0
        %1143 = vmatprep.mubr.bf16.mxu0 0
        %1144 = vmatmul.mubr.bf16.gmra.mrb[0].mxu0 %v1030
        %v1145 = vpop.f32.mrb[0].mxu0
        %v1146 = vadd.f32 0.0, %v1145
        %v1147 = vpop.f32.mrb[0].mxu0
        %v1148 = vpop.f32.mrb[0].mxu0
        %v1149 = vadd.f32 0.0, %v1148
        %v1150 = vpop.f32.mrb[0].mxu0
        %1151 = vmatprep.mubr.bf16.mxu0 0
        %1152 = vmatmul.mubr.bf16.gmra.mrb[0].mxu0 %v1032
        %v1153 = vpop.f32.mrb[0].mxu0
        %v1154 = vpop.f32.mrb[0].mxu0
        %v1155 = vpop.f32.mrb[0].mxu0
        %v1156 = vadd.f32 0.0, %v1155
        %v1157 = vpop.f32.mrb[0].mxu0
        %1158 = vmatprep.mubr.bf16.mxu0 0
        %1159 = vmatmul.mubr.bf16.gmra.mrb[0].mxu0 %v1034
        %v1160 = vpop.f32.mrb[0].mxu0
        %v1161 = vadd.f32 0.0, %v1160
        %v1162 = vpop.f32.mrb[0].mxu0
        %v1163 = vpop.f32.mrb[0].mxu0
        %v1164 = vpop.f32.mrb[0].mxu0
        %1165 = vmatprep.mubr.bf16.mxu0 0
        %1166 = vmatmul.mubr.bf16.gmra.mrb[0].mxu0 %v1036
        %v1167 = vpop.f32.mrb[0].mxu0
        %v1168 = vadd.f32 0.0, %v1167
        %v1169 = vpop.f32.mrb[0].mxu0
        %v1170 = vpop.f32.mrb[0].mxu0
        %v1171 = vadd.f32 0.0, %v1170
        %v1172 = vpop.f32.mrb[0].mxu0
        %1173 = vmatprep.mubr.bf16.mxu0 0
        %1174 = vmatmul.mubr.bf16.gmra.mrb[0].mxu0 %v1038
        %v1175 = vpop.f32.mrb[0].mxu0
        %v1176 = vpop.f32.mrb[0].mxu0
        %v1177 = vpop.f32.mrb[0].mxu0
        %v1178 = vadd.f32 0.0, %v1177
        %v1179 = vpop.f32.mrb[0].mxu0
        %1180 = vmatprep.mubr.bf16.mxu0 0
        %1181 = vmatmul.mubr.bf16.gmra.mrb[0].mxu0 %v1040
        %v1182 = vpop.f32.mrb[0].mxu0
        %v1183 = vadd.f32 0.0, %v1182
        %v1184 = vpop.f32.mrb[0].mxu0
        %v1185 = vpop.f32.mrb[0].mxu0
        %v1186 = vpop.f32.mrb[0].mxu0
        %1187 = vmatprep.mubr.bf16.mxu0 0
        %1188 = vmatmul.mubr.bf16.gmra.mrb[0].mxu0 %v1042
        %v1189 = vpop.f32.mrb[0].mxu0
        %v1190 = vadd.f32 0.0, %v1189
        %v1191 = vpop.f32.mrb[0].mxu0
        %v1192 = vpop.f32.mrb[0].mxu0
        %v1193 = vadd.f32 0.0, %v1192
        %v1194 = vpop.f32.mrb[0].mxu0
        %1195 = vmatprep.mubr.bf16.mxu0 0
        %1196 = vmatmul.mubr.bf16.gmra.mrb[0].mxu0 %v1044
        %v1197 = vpop.f32.mrb[0].mxu0
        %v1198 = vpop.f32.mrb[0].mxu0
        %v1199 = vpop.f32.mrb[0].mxu0
        %v1200 = vadd.f32 0.0, %v1199
        %v1201 = vpop.f32.mrb[0].mxu0
        %1202 = vmatprep.mubr.bf16.mxu0 0
        %1203 = vmatmul.mubr.bf16.gmra.mrb[0].mxu0 %v1046
        %v1204 = vpop.f32.mrb[0].mxu0
        %v1205 = vadd.f32 0.0, %v1204
        %v1206 = vpop.f32.mrb[0].mxu0
        %v1207 = vpop.f32.mrb[0].mxu0
        %v1208 = vpop.f32.mrb[0].mxu0
        %1209 = vmatprep.mubr.bf16.mxu0 0
        %1210 = vmatmul.mubr.bf16.gmra.mrb[0].mxu0 %v1048
        %v1211 = vpop.f32.mrb[0].mxu0
        %v1212 = vadd.f32 0.0, %v1211
        %v1213 = vpop.f32.mrb[0].mxu0
        %v1214 = vpop.f32.mrb[0].mxu0
        %v1215 = vadd.f32 0.0, %v1214
        %v1216 = vpop.f32.mrb[0].mxu0
        %1217 = vmatprep.mubr.bf16.mxu0 0
        %1218 = vmatmul.mubr.bf16.gmra.mrb[0].mxu0 %v1050
        %v1219 = vpop.f32.mrb[0].mxu0
        %v1220 = vpop.f32.mrb[0].mxu0
        %v1221 = vpop.f32.mrb[0].mxu0
        %v1222 = vadd.f32 0.0, %v1221
        %v1223 = vpop.f32.mrb[0].mxu0
        %1224 = vmatprep.mubr.bf16.mxu0 0
        %1225 = vmatmul.mubr.bf16.gmra.mrb[0].mxu0 %v1049
        %v1226 = vpop.f32.mrb[0].mxu0
        %v1227 = vadd.f32 0.0, %v1226
        %v1228 = vpop.f32.mrb[0].mxu0
        %v1229 = vpop.f32.mrb[0].mxu0
        %v1230 = vpop.f32.mrb[0].mxu0
        %1231 = vdwg.mxu0
        %v1232 = vadd.f32 %v911, %v1146
        %v1233 = vadd.f32 %v914, %v1149
        %v1234 = vadd.f32 %v921, %v1156
        %v1235 = vadd.f32 %v926, %v1161
        %v1236 = vadd.f32 %v933, %v1168
        %v1237 = vadd.f32 %v936, %v1171
        %v1238 = vadd.f32 %v943, %v1178
        %v1239 = vadd.f32 %v948, %v1183
        %v1240 = vadd.f32 %v955, %v1190
        %v1241 = vadd.f32 %v958, %v1193
        %v1242 = vadd.f32 %v965, %v1200
        %v1243 = vadd.f32 %v970, %v1205
        %v1244 = vadd.f32 %v977, %v1212
        %v1245 = vadd.f32 %v980, %v1215
        %v1246 = vadd.f32 %v987, %v1222
        %v1247 = vadd.f32 %v992, %v1227
        %v1248 = vld [vmem:[%s2] sm:$0x1]
        %v1250 = vlaneseq
        %v1251 = vshrl.u32 %v1250, 7
        %v1252 = vsub.s32 0, %v1251
        %v1253 = vrot.slane %v1248, %v1252
        %v1255 = vmul.f32 %v1232, %v1253
        %v1256 = vmul.f32 %v1233, %v1253
        %v1257 = vmul.f32 %v1234, %v1253
        %v1258 = vmul.f32 %v1235, %v1253
        %v1259 = vmul.f32 %v1236, %v1253
        %v1260 = vmul.f32 %v1237, %v1253
        %v1261 = vmul.f32 %v1238, %v1253
        %v1262 = vmul.f32 %v1239, %v1253
        %v1263 = vmul.f32 %v1240, %v1253
        %v1264 = vmul.f32 %v1241, %v1253
        %v1265 = vmul.f32 %v1242, %v1253
        %v1266 = vmul.f32 %v1243, %v1253
        %v1267 = vmul.f32 %v1244, %v1253
        %v1268 = vmul.f32 %v1245, %v1253
        %v1269 = vmul.f32 %v1246, %v1253
        %v1270 = vmul.f32 %v1247, %v1253
        %v1271 = vld [vmem:[%s3] sm:$0x1]
        %v1273 = vlaneseq
        %v1274 = vshrl.u32 %v1273, 7
        %v1275 = vsub.s32 0, %v1274
        %v1276 = vrot.slane %v1271, %v1275
        %v1278 = vadd.f32 %v1255, %v1276
        %v1279 = vadd.f32 %v1256, %v1276
        %v1280 = vadd.f32 %v1257, %v1276
        %v1281 = vadd.f32 %v1258, %v1276
        %v1282 = vadd.f32 %v1259, %v1276
        %v1283 = vadd.f32 %v1260, %v1276
        %v1284 = vadd.f32 %v1261, %v1276
        %v1285 = vadd.f32 %v1262, %v1276
        %v1286 = vadd.f32 %v1263, %v1276
        %v1287 = vadd.f32 %v1264, %v1276
        %v1288 = vadd.f32 %v1265, %v1276
        %v1289 = vadd.f32 %v1266, %v1276
        %v1290 = vadd.f32 %v1267, %v1276
        %v1291 = vadd.f32 %v1268, %v1276
        %v1292 = vadd.f32 %v1269, %v1276
        %v1293 = vadd.f32 %v1270, %v1276
        %v1294 = vmax.f32 %v1278, 0.0
        %v1295 = vmax.f32 %v1279, 0.0
        %v1296 = vmax.f32 %v1280, 0.0
        %v1297 = vmax.f32 %v1281, 0.0
        %v1298 = vmax.f32 %v1282, 0.0
        %v1299 = vmax.f32 %v1283, 0.0
        %v1300 = vmax.f32 %v1284, 0.0
        %v1301 = vmax.f32 %v1285, 0.0
        %v1302 = vmax.f32 %v1286, 0.0
        %v1303 = vmax.f32 %v1287, 0.0
        %v1304 = vmax.f32 %v1288, 0.0
        %v1305 = vmax.f32 %v1289, 0.0
        %v1306 = vmax.f32 %v1290, 0.0
        %v1307 = vmax.f32 %v1291, 0.0
        %v1308 = vmax.f32 %v1292, 0.0
        %v1309 = vmax.f32 %v1293, 0.0
        %v1310 = vpack.c.bf16 %v1295, %v1294
        %v1312 = vshrl.u32 %v1310, 16
        %v1314 = vrot.slane %v1312, 7
        %v1315 = vshll.u32 %v1310, 16
        %v1317 = vor.u32 %v1314, %v1315
        %v1320 = vld [vmem:[#allocation2] sm:$0xff]
        %v1321 = vsel %vm356, %v1317, %v1320
        %1322 = vst [vmem:[#allocation2] sm:$0xff] %v1321
        %v1323 = vld [vmem:[#allocation2 + $0x8] sm:$0x1]
        %v1324 = vsel %vm362, %v1314, %v1323
        %1325 = vst [vmem:[#allocation2 + $0x8] sm:$0x1] %v1324
        %v1326 = vpack.c.bf16 %v1297, %v1296
        %v1328 = vshrl.u32 %v1326, 16
        %v1330 = vrot.slane %v1328, 3
        %v1331 = vshll.u32 %v1326, 16
        %v1333 = vrot.slane %v1331, 4
        %v1334 = vor.u32 %v1330, %v1333
        %v1336 = vld [vmem:[#allocation2 + $0x8] sm:$0xf0]
        %v1337 = vsel %vm381, %v1334, %v1336
        %1338 = vst [vmem:[#allocation2 + $0x8] sm:$0xf0] %v1337
        %v1339 = vld [vmem:[#allocation2 + $0x10] sm:$0x1f]
        %v1340 = vsel %vm387, %v1334, %v1339
        %1341 = vst [vmem:[#allocation2 + $0x10] sm:$0x1f] %v1340
        %v1342 = vpack.c.bf16 %v1299, %v1298
        %v1344 = vshrl.u32 %v1342, 16
        %v1346 = vrot.slane %v1344, 7
        %v1347 = vshll.u32 %v1342, 16
        %v1349 = vor.u32 %v1346, %v1347
        %v1352 = vld [vmem:[#allocation2 + $0x18] sm:$0xff]
        %v1353 = vsel %vm356, %v1349, %v1352
        %1354 = vst [vmem:[#allocation2 + $0x18] sm:$0xff] %v1353
        %v1355 = vld [vmem:[#allocation2 + $0x20] sm:$0x1]
        %v1356 = vsel %vm362, %v1346, %v1355
        %1357 = vst [vmem:[#allocation2 + $0x20] sm:$0x1] %v1356
        %v1358 = vpack.c.bf16 %v1301, %v1300
        %v1360 = vshrl.u32 %v1358, 16
        %v1362 = vrot.slane %v1360, 3
        %v1363 = vshll.u32 %v1358, 16
        %v1365 = vrot.slane %v1363, 4
        %v1366 = vor.u32 %v1362, %v1365
        %v1368 = vld [vmem:[#allocation2 + $0x20] sm:$0xf0]
        %v1369 = vsel %vm381, %v1366, %v1368
        %1370 = vst [vmem:[#allocation2 + $0x20] sm:$0xf0] %v1369
        %v1371 = vld [vmem:[#allocation2 + $0x28] sm:$0x1f]
        %v1372 = vsel %vm387, %v1366, %v1371
        %1373 = vst [vmem:[#allocation2 + $0x28] sm:$0x1f] %v1372
        %v1374 = vpack.c.bf16 %v1303, %v1302
        %v1376 = vshrl.u32 %v1374, 16
        %v1378 = vrot.slane %v1376, 7
        %v1379 = vshll.u32 %v1374, 16
        %v1381 = vor.u32 %v1378, %v1379
        %v1384 = vld [vmem:[#allocation2 + $0x30] sm:$0xff]
        %v1385 = vsel %vm356, %v1381, %v1384
        %1386 = vst [vmem:[#allocation2 + $0x30] sm:$0xff] %v1385
        %v1387 = vld [vmem:[#allocation2 + $0x38] sm:$0x1]
        %v1388 = vsel %vm362, %v1378, %v1387
        %1389 = vst [vmem:[#allocation2 + $0x38] sm:$0x1] %v1388
        %v1390 = vpack.c.bf16 %v1305, %v1304
        %v1392 = vshrl.u32 %v1390, 16
        %v1394 = vrot.slane %v1392, 3
        %v1395 = vshll.u32 %v1390, 16
        %v1397 = vrot.slane %v1395, 4
        %v1398 = vor.u32 %v1394, %v1397
        %v1400 = vld [vmem:[#allocation2 + $0x38] sm:$0xf0]
        %v1401 = vsel %vm381, %v1398, %v1400
        %1402 = vst [vmem:[#allocation2 + $0x38] sm:$0xf0] %v1401
        %v1403 = vld [vmem:[#allocation2 + $0x40] sm:$0x1f]
        %v1404 = vsel %vm387, %v1398, %v1403
        %1405 = vst [vmem:[#allocation2 + $0x40] sm:$0x1f] %v1404
        %v1406 = vpack.c.bf16 %v1307, %v1306
        %v1408 = vshrl.u32 %v1406, 16
        %v1410 = vrot.slane %v1408, 7
        %v1411 = vshll.u32 %v1406, 16
        %v1413 = vor.u32 %v1410, %v1411
        %v1416 = vld [vmem:[#allocation2 + $0x48] sm:$0xff]
        %v1417 = vsel %vm356, %v1413, %v1416
        %1418 = vst [vmem:[#allocation2 + $0x48] sm:$0xff] %v1417
        %v1419 = vld [vmem:[#allocation2 + $0x50] sm:$0x1]
        %v1420 = vsel %vm362, %v1410, %v1419
        %1421 = vst [vmem:[#allocation2 + $0x50] sm:$0x1] %v1420
        %v1422 = vpack.c.bf16 %v1309, %v1308
        %v1424 = vshrl.u32 %v1422, 16
        %v1426 = vrot.slane %v1424, 3
        %v1427 = vshll.u32 %v1422, 16
        %v1429 = vrot.slane %v1427, 4
        %v1430 = vor.u32 %v1426, %v1429
        %v1432 = vld [vmem:[#allocation2 + $0x50] sm:$0xf0]
        %v1433 = vsel %vm381, %v1430, %v1432
        %1434 = vst [vmem:[#allocation2 + $0x50] sm:$0xf0] %v1433
        %v1435 = vld [vmem:[#allocation2 + $0x58] sm:$0x1f]
        %v1436 = vsel %vm387, %v1430, %v1435
        %1437 = vst [vmem:[#allocation2 + $0x58] sm:$0x1f] %v1436
        %v1438 = vld [vmem:[#allocation2] sm:$0xff]
        %v1439 = vld [vmem:[#allocation2 + $0x8] sm:$0xff]
        %v1440 = vld [vmem:[#allocation2 + $0x10] sm:$0xff]
        %v1441 = vld [vmem:[#allocation2 + $0x18] sm:$0xff]
        %v1442 = vld [vmem:[#allocation2 + $0x20] sm:$0xff]
        %v1443 = vld [vmem:[#allocation2 + $0x28] sm:$0xff]
        %v1444 = vld [vmem:[#allocation2 + $0x30] sm:$0xff]
        %v1445 = vld [vmem:[#allocation2 + $0x38] sm:$0xff]
        %v1446 = vld [vmem:[#allocation2 + $0x40] sm:$0xff]
        %v1447 = vld [vmem:[#allocation2 + $0x48] sm:$0xff]
        %v1448 = vld [vmem:[#allocation2 + $0x50] sm:$0xff]
        %v1449 = vld [vmem:[#allocation2 + $0x58] sm:$0x7f]
        %v1450 = vld [vmem:[#allocation8] sm:$0xf]
        %v1451 = vld [vmem:[#allocation8 + $0x4] sm:$0xf]
        %v1452 = vld [vmem:[#allocation8 + $0x8] sm:$0xf]
        %v1453 = vld [vmem:[#allocation8 + $0xc] sm:$0xf]
        %v1454 = vld [vmem:[#allocation8 + $0x10] sm:$0xf]
        %v1455 = vld [vmem:[#allocation8 + $0x14] sm:$0xf]
        %v1456 = vld [vmem:[#allocation8 + $0x18] sm:$0xf]
        %v1457 = vld [vmem:[#allocation8 + $0x1c] sm:$0xf]
        %v1458 = vld [vmem:[#allocation8 + $0x20] sm:$0xf]
        %v1459 = vld [vmem:[#allocation8 + $0x24] sm:$0xf]
        %v1460 = vld [vmem:[#allocation8 + $0x28] sm:$0xf]
        %v1461 = vld [vmem:[#allocation8 + $0x2c] sm:$0xf]
        %v1462 = vld [vmem:[#allocation8 + $0x30] sm:$0xf]
        %v1463 = vld [vmem:[#allocation8 + $0x34] sm:$0xf]
        %v1464 = vld [vmem:[#allocation8 + $0x38] sm:$0xf]
        %v1465 = vld [vmem:[#allocation8 + $0x3c] sm:$0xf]
        %v1466 = vld [vmem:[#allocation2 + $0x58] sm:$0xff]
        %s1467 = scalar_lea.vmem [#allocation8], 64
        %v1468 = vld [vmem:[%s1467] sm:$0xf]
        %v1469 = vld [vmem:[%s1467 + $0x4] sm:$0xf]
        %v1470 = vld [vmem:[%s1467 + $0x8] sm:$0xf]
        %v1471 = vld [vmem:[%s1467 + $0xc] sm:$0xf]
        %v1472 = vld [vmem:[%s1467 + $0x10] sm:$0xf]
        %v1473 = vld [vmem:[%s1467 + $0x14] sm:$0xf]
        %v1474 = vld [vmem:[%s1467 + $0x18] sm:$0xf]
        %v1475 = vld [vmem:[%s1467 + $0x1c] sm:$0xf]
        %v1476 = vld [vmem:[%s1467 + $0x20] sm:$0xf]
        %v1477 = vld [vmem:[%s1467 + $0x24] sm:$0xf]
        %v1478 = vld [vmem:[%s1467 + $0x28] sm:$0xf]
        %v1479 = vld [vmem:[%s1467 + $0x2c] sm:$0xf]
        %v1480 = vld [vmem:[%s1467 + $0x30] sm:$0xf]
        %v1481 = vld [vmem:[%s1467 + $0x34] sm:$0xf]
        %v1482 = vld [vmem:[%s1467 + $0x38] sm:$0xf]
        %v1483 = vld [vmem:[%s1467 + $0x3c] sm:$0xf]
        %v1485 = vshrl.u32 %v1438, 16
        %v1487 = vshll.u32 %v1438, 16
        %v1489 = vrot.slane %v1487, 1
        %v1490 = vor.u32 %v1485, %v1489
        %v1492 = vshll.u32 %v1439, 16
        %v1494 = vrot.slane %v1492, 1
        %v1495 = vsel %vm551, %v1490, %v1494
        %v1496 = vshrl.u32 %v1439, 16
        %v1498 = vor.u32 %v1496, %v1494
        %v1500 = vshll.u32 %v1440, 16
        %v1502 = vrot.slane %v1500, 1
        %v1503 = vsel %vm551, %v1498, %v1502
        %v1504 = vshrl.u32 %v1440, 16
        %v1506 = vor.u32 %v1504, %v1502
        %v1508 = vshll.u32 %v1441, 16
        %v1510 = vrot.slane %v1508, 1
        %v1511 = vsel %vm551, %v1506, %v1510
        %v1512 = vshrl.u32 %v1441, 16
        %v1514 = vor.u32 %v1512, %v1510
        %v1516 = vshll.u32 %v1442, 16
        %v1518 = vrot.slane %v1516, 1
        %v1519 = vsel %vm551, %v1514, %v1518
        %v1520 = vshrl.u32 %v1442, 16
        %v1522 = vor.u32 %v1520, %v1518
        %v1524 = vshll.u32 %v1443, 16
        %v1526 = vrot.slane %v1524, 1
        %v1527 = vsel %vm551, %v1522, %v1526
        %v1528 = vshrl.u32 %v1443, 16
        %v1530 = vor.u32 %v1528, %v1526
        %v1532 = vshll.u32 %v1444, 16
        %v1534 = vrot.slane %v1532, 1
        %v1535 = vsel %vm551, %v1530, %v1534
        %v1536 = vshrl.u32 %v1444, 16
        %v1538 = vor.u32 %v1536, %v1534
        %v1540 = vshll.u32 %v1445, 16
        %v1542 = vrot.slane %v1540, 1
        %v1543 = vsel %vm551, %v1538, %v1542
        %v1544 = vshrl.u32 %v1445, 16
        %v1546 = vor.u32 %v1544, %v1542
        %v1548 = vshll.u32 %v1446, 16
        %v1550 = vrot.slane %v1548, 1
        %v1551 = vsel %vm551, %v1546, %v1550
        %v1552 = vshrl.u32 %v1446, 16
        %v1554 = vor.u32 %v1552, %v1550
        %v1556 = vshll.u32 %v1447, 16
        %v1558 = vrot.slane %v1556, 1
        %v1559 = vsel %vm551, %v1554, %v1558
        %v1560 = vshrl.u32 %v1447, 16
        %v1562 = vor.u32 %v1560, %v1558
        %v1564 = vshll.u32 %v1448, 16
        %v1566 = vrot.slane %v1564, 1
        %v1567 = vsel %vm551, %v1562, %v1566
        %v1568 = vshrl.u32 %v1448, 16
        %v1570 = vor.u32 %v1568, %v1566
        %v1572 = vshll.u32 %v1466, 16
        %v1574 = vrot.slane %v1572, 1
        %v1575 = vsel %vm551, %v1570, %v1574
        %v1576 = vshrl.u32 %v1466, 16
        %v1578 = vor.u32 %v1576, %v1574
        %v1607 = vunpack.c.l.b16 %v1468
        %v1608 = vunpack.c.l.b16 %v1469
        %v1609 = vunpack.c.l.b16 %v1470
        %v1610 = vunpack.c.l.b16 %v1471
        %v1611 = vunpack.c.l.b16 %v1472
        %v1612 = vunpack.c.l.b16 %v1473
        %v1613 = vunpack.c.l.b16 %v1474
        %v1614 = vunpack.c.l.b16 %v1475
        %v1615 = vunpack.c.l.b16 %v1476
        %v1616 = vunpack.c.l.b16 %v1477
        %v1617 = vunpack.c.l.b16 %v1478
        %v1618 = vunpack.c.l.b16 %v1479
        %v1619 = vunpack.c.l.b16 %v1480
        %v1620 = vunpack.c.l.b16 %v1481
        %v1621 = vunpack.c.l.b16 %v1482
        %v1622 = vunpack.c.l.b16 %v1483
        %v1623 = vpack.c.b16 %v1608, %v1607
        %v1624 = vpack.c.b16 %v1610, %v1609
        %v1625 = vpack.c.b16 %v1612, %v1611
        %v1626 = vpack.c.b16 %v1614, %v1613
        %v1627 = vpack.c.b16 %v1616, %v1615
        %v1628 = vpack.c.b16 %v1618, %v1617
        %v1629 = vpack.c.b16 %v1620, %v1619
        %v1630 = vpack.c.b16 %v1622, %v1621
        %1639 = vmatprep.subr.bf16.mxu0 0
        %1640 = vmatpush1.bf16.msra.mxu0 %v1623
        %1641 = vmatprep.subr.bf16.mxu0 0
        %1642 = vmatpush1.bf16.msra.mxu0 %v1624
        %1643 = vmatprep.subr.bf16.mxu0 0
        %1644 = vmatpush1.bf16.msra.mxu0 %v1625
        %1645 = vmatprep.subr.bf16.mxu0 0
        %1646 = vmatpush1.bf16.msra.mxu0 %v1626
        %1647 = vmatprep.subr.bf16.mxu0 0
        %1648 = vmatpush1.bf16.msra.mxu0 %v1627
        %1649 = vmatprep.subr.bf16.mxu0 0
        %1650 = vmatpush1.bf16.msra.mxu0 %v1628
        %1651 = vmatprep.subr.bf16.mxu0 0
        %1652 = vmatpush1.bf16.msra.mxu0 %v1629
        %1653 = vmatprep.subr.bf16.mxu0 0
        %1654 = vmatpush1.bf16.msra.mxu0 %v1630
        %1655 = vmatprep.subr.bf16.mxu0 0
        %1656 = vmatpush1.bf16.msra.mxu0 0
        %1657 = vmatprep.subr.bf16.mxu0 0
        %1658 = vmatpush1.bf16.msra.mxu0 0
        %1659 = vmatprep.subr.bf16.mxu0 0
        %1660 = vmatpush1.bf16.msra.mxu0 0
        %1661 = vmatprep.subr.bf16.mxu0 0
        %1662 = vmatpush1.bf16.msra.mxu0 0
        %1663 = vmatprep.subr.bf16.mxu0 0
        %1664 = vmatpush1.bf16.msra.mxu0 0
        %1665 = vmatprep.subr.bf16.mxu0 0
        %1666 = vmatpush1.bf16.msra.mxu0 0
        %1667 = vmatprep.subr.bf16.mxu0 0
        %1668 = vmatpush1.bf16.msra.mxu0 0
        %1669 = vmatprep.subr.bf16.mxu0 0
        %1670 = vmatpush1.bf16.msra.mxu0 0
        %1671 = vmatprep.mubr.bf16.mxu0 0
        %1672 = vmatmul.mubr.bf16.gmra.mrb[0].mxu0 %v1495
        %v1673 = vpop.f32.mrb[0].mxu0
        %v1674 = vadd.f32 0.0, %v1673
        %v1675 = vpop.f32.mrb[0].mxu0
        %v1676 = vpop.f32.mrb[0].mxu0
        %v1677 = vadd.f32 0.0, %v1676
        %v1678 = vpop.f32.mrb[0].mxu0
        %1679 = vmatprep.mubr.bf16.mxu0 0
        %1680 = vmatmul.mubr.bf16.gmra.mrb[0].mxu0 %v1503
        %v1681 = vpop.f32.mrb[0].mxu0
        %v1682 = vpop.f32.mrb[0].mxu0
        %v1683 = vpop.f32.mrb[0].mxu0
        %v1684 = vadd.f32 0.0, %v1683
        %v1685 = vpop.f32.mrb[0].mxu0
        %1686 = vmatprep.mubr.bf16.mxu0 0
        %1687 = vmatmul.mubr.bf16.gmra.mrb[0].mxu0 %v1511
        %v1688 = vpop.f32.mrb[0].mxu0
        %v1689 = vadd.f32 0.0, %v1688
        %v1690 = vpop.f32.mrb[0].mxu0
        %v1691 = vpop.f32.mrb[0].mxu0
        %v1692 = vpop.f32.mrb[0].mxu0
        %1693 = vmatprep.mubr.bf16.mxu0 0
        %1694 = vmatmul.mubr.bf16.gmra.mrb[0].mxu0 %v1519
        %v1695 = vpop.f32.mrb[0].mxu0
        %v1696 = vadd.f32 0.0, %v1695
        %v1697 = vpop.f32.mrb[0].mxu0
        %v1698 = vpop.f32.mrb[0].mxu0
        %v1699 = vadd.f32 0.0, %v1698
        %v1700 = vpop.f32.mrb[0].mxu0
        %1701 = vmatprep.mubr.bf16.mxu0 0
        %1702 = vmatmul.mubr.bf16.gmra.mrb[0].mxu0 %v1527
        %v1703 = vpop.f32.mrb[0].mxu0
        %v1704 = vpop.f32.mrb[0].mxu0
        %v1705 = vpop.f32.mrb[0].mxu0
        %v1706 = vadd.f32 0.0, %v1705
        %v1707 = vpop.f32.mrb[0].mxu0
        %1708 = vmatprep.mubr.bf16.mxu0 0
        %1709 = vmatmul.mubr.bf16.gmra.mrb[0].mxu0 %v1535
        %v1710 = vpop.f32.mrb[0].mxu0
        %v1711 = vadd.f32 0.0, %v1710
        %v1712 = vpop.f32.mrb[0].mxu0
        %v1713 = vpop.f32.mrb[0].mxu0
        %v1714 = vpop.f32.mrb[0].mxu0
        %1715 = vmatprep.mubr.bf16.mxu0 0
        %1716 = vmatmul.mubr.bf16.gmra.mrb[0].mxu0 %v1543
        %v1717 = vpop.f32.mrb[0].mxu0
        %v1718 = vadd.f32 0.0, %v1717
        %v1719 = vpop.f32.mrb[0].mxu0
        %v1720 = vpop.f32.mrb[0].mxu0
        %v1721 = vadd.f32 0.0, %v1720
        %v1722 = vpop.f32.mrb[0].mxu0
        %1723 = vmatprep.mubr.bf16.mxu0 0
        %1724 = vmatmul.mubr.bf16.gmra.mrb[0].mxu0 %v1551
        %v1725 = vpop.f32.mrb[0].mxu0
        %v1726 = vpop.f32.mrb[0].mxu0
        %v1727 = vpop.f32.mrb[0].mxu0
        %v1728 = vadd.f32 0.0, %v1727
        %v1729 = vpop.f32.mrb[0].mxu0
        %1730 = vmatprep.mubr.bf16.mxu0 0
        %1731 = vmatmul.mubr.bf16.gmra.mrb[0].mxu0 %v1559
        %v1732 = vpop.f32.mrb[0].mxu0
        %v1733 = vadd.f32 0.0, %v1732
        %v1734 = vpop.f32.mrb[0].mxu0
        %v1735 = vpop.f32.mrb[0].mxu0
        %v1736 = vpop.f32.mrb[0].mxu0
        %1737 = vmatprep.mubr.bf16.mxu0 0
        %1738 = vmatmul.mubr.bf16.gmra.mrb[0].mxu0 %v1567
        %v1739 = vpop.f32.mrb[0].mxu0
        %v1740 = vadd.f32 0.0, %v1739
        %v1741 = vpop.f32.mrb[0].mxu0
        %v1742 = vpop.f32.mrb[0].mxu0
        %v1743 = vadd.f32 0.0, %v1742
        %v1744 = vpop.f32.mrb[0].mxu0
        %1745 = vmatprep.mubr.bf16.mxu0 0
        %1746 = vmatmul.mubr.bf16.gmra.mrb[0].mxu0 %v1575
        %v1747 = vpop.f32.mrb[0].mxu0
        %v1748 = vpop.f32.mrb[0].mxu0
        %v1749 = vpop.f32.mrb[0].mxu0
        %v1750 = vadd.f32 0.0, %v1749
        %v1751 = vpop.f32.mrb[0].mxu0
        %1752 = vmatprep.mubr.bf16.mxu0 0
        %1753 = vmatmul.mubr.bf16.gmra.mrb[0].mxu0 %v1578
        %v1754 = vpop.f32.mrb[0].mxu0
        %v1755 = vadd.f32 0.0, %v1754
        %v1756 = vpop.f32.mrb[0].mxu0
        %v1757 = vpop.f32.mrb[0].mxu0
        %v1758 = vpop.f32.mrb[0].mxu0
        %1759 = vdwg.mxu0
        %v1776 = vunpack.c.l.b16 %v1450
        %v1777 = vunpack.c.l.b16 %v1451
        %v1778 = vunpack.c.l.b16 %v1452
        %v1779 = vunpack.c.l.b16 %v1453
        %v1780 = vunpack.c.l.b16 %v1454
        %v1781 = vunpack.c.l.b16 %v1455
        %v1782 = vunpack.c.l.b16 %v1456
        %v1783 = vunpack.c.l.b16 %v1457
        %v1784 = vunpack.c.l.b16 %v1458
        %v1785 = vunpack.c.l.b16 %v1459
        %v1786 = vunpack.c.l.b16 %v1460
        %v1787 = vunpack.c.l.b16 %v1461
        %v1788 = vunpack.c.l.b16 %v1462
        %v1789 = vunpack.c.l.b16 %v1463
        %v1790 = vunpack.c.l.b16 %v1464
        %v1791 = vunpack.c.l.b16 %v1465
        %v1792 = vpack.c.b16 %v1777, %v1776
        %v1793 = vpack.c.b16 %v1779, %v1778
        %v1794 = vpack.c.b16 %v1781, %v1780
        %v1795 = vpack.c.b16 %v1783, %v1782
        %v1796 = vpack.c.b16 %v1785, %v1784
        %v1797 = vpack.c.b16 %v1787, %v1786
        %v1798 = vpack.c.b16 %v1789, %v1788
        %v1799 = vpack.c.b16 %v1791, %v1790
        %1808 = vmatprep.subr.bf16.mxu0 0
        %1809 = vmatpush1.bf16.msra.mxu0 %v1792
        %1810 = vmatprep.subr.bf16.mxu0 0
        %1811 = vmatpush1.bf16.msra.mxu0 %v1793
        %1812 = vmatprep.subr.bf16.mxu0 0
        %1813 = vmatpush1.bf16.msra.mxu0 %v1794
        %1814 = vmatprep.subr.bf16.mxu0 0
        %1815 = vmatpush1.bf16.msra.mxu0 %v1795
        %1816 = vmatprep.subr.bf16.mxu0 0
        %1817 = vmatpush1.bf16.msra.mxu0 %v1796
        %1818 = vmatprep.subr.bf16.mxu0 0
        %1819 = vmatpush1.bf16.msra.mxu0 %v1797
        %1820 = vmatprep.subr.bf16.mxu0 0
        %1821 = vmatpush1.bf16.msra.mxu0 %v1798
        %1822 = vmatprep.subr.bf16.mxu0 0
        %1823 = vmatpush1.bf16.msra.mxu0 %v1799
        %1824 = vmatprep.subr.bf16.mxu0 0
        %1825 = vmatpush1.bf16.msra.mxu0 0
        %1826 = vmatprep.subr.bf16.mxu0 0
        %1827 = vmatpush1.bf16.msra.mxu0 0
        %1828 = vmatprep.subr.bf16.mxu0 0
        %1829 = vmatpush1.bf16.msra.mxu0 0
        %1830 = vmatprep.subr.bf16.mxu0 0
        %1831 = vmatpush1.bf16.msra.mxu0 0
        %1832 = vmatprep.subr.bf16.mxu0 0
        %1833 = vmatpush1.bf16.msra.mxu0 0
        %1834 = vmatprep.subr.bf16.mxu0 0
        %1835 = vmatpush1.bf16.msra.mxu0 0
        %1836 = vmatprep.subr.bf16.mxu0 0
        %1837 = vmatpush1.bf16.msra.mxu0 0
        %1838 = vmatprep.subr.bf16.mxu0 0
        %1839 = vmatpush1.bf16.msra.mxu0 0
        %1840 = vmatprep.mubr.bf16.mxu0 0
        %1841 = vmatmul.mubr.bf16.gmra.mrb[0].mxu0 %v1438
        %v1842 = vpop.f32.mrb[0].mxu0
        %v1843 = vadd.f32 %v1674, %v1842
        %v1844 = vpop.f32.mrb[0].mxu0
        %v1845 = vpop.f32.mrb[0].mxu0
        %v1846 = vadd.f32 %v1677, %v1845
        %v1847 = vpop.f32.mrb[0].mxu0
        %1848 = vmatprep.mubr.bf16.mxu0 0
        %1849 = vmatmul.mubr.bf16.gmra.mrb[0].mxu0 %v1439
        %v1850 = vpop.f32.mrb[0].mxu0
        %v1851 = vpop.f32.mrb[0].mxu0
        %v1852 = vpop.f32.mrb[0].mxu0
        %v1853 = vadd.f32 %v1684, %v1852
        %v1854 = vpop.f32.mrb[0].mxu0
        %1855 = vmatprep.mubr.bf16.mxu0 0
        %1856 = vmatmul.mubr.bf16.gmra.mrb[0].mxu0 %v1440
        %v1857 = vpop.f32.mrb[0].mxu0
        %v1858 = vadd.f32 %v1689, %v1857
        %v1859 = vpop.f32.mrb[0].mxu0
        %v1860 = vpop.f32.mrb[0].mxu0
        %v1861 = vpop.f32.mrb[0].mxu0
        %1862 = vmatprep.mubr.bf16.mxu0 0
        %1863 = vmatmul.mubr.bf16.gmra.mrb[0].mxu0 %v1441
        %v1864 = vpop.f32.mrb[0].mxu0
        %v1865 = vadd.f32 %v1696, %v1864
        %v1866 = vpop.f32.mrb[0].mxu0
        %v1867 = vpop.f32.mrb[0].mxu0
        %v1868 = vadd.f32 %v1699, %v1867
        %v1869 = vpop.f32.mrb[0].mxu0
        %1870 = vmatprep.mubr.bf16.mxu0 0
        %1871 = vmatmul.mubr.bf16.gmra.mrb[0].mxu0 %v1442
        %v1872 = vpop.f32.mrb[0].mxu0
        %v1873 = vpop.f32.mrb[0].mxu0
        %v1874 = vpop.f32.mrb[0].mxu0
        %v1875 = vadd.f32 %v1706, %v1874
        %v1876 = vpop.f32.mrb[0].mxu0
        %1877 = vmatprep.mubr.bf16.mxu0 0
        %1878 = vmatmul.mubr.bf16.gmra.mrb[0].mxu0 %v1443
        %v1879 = vpop.f32.mrb[0].mxu0
        %v1880 = vadd.f32 %v1711, %v1879
        %v1881 = vpop.f32.mrb[0].mxu0
        %v1882 = vpop.f32.mrb[0].mxu0
        %v1883 = vpop.f32.mrb[0].mxu0
        %1884 = vmatprep.mubr.bf16.mxu0 0
        %1885 = vmatmul.mubr.bf16.gmra.mrb[0].mxu0 %v1444
        %v1886 = vpop.f32.mrb[0].mxu0
        %v1887 = vadd.f32 %v1718, %v1886
        %v1888 = vpop.f32.mrb[0].mxu0
        %v1889 = vpop.f32.mrb[0].mxu0
        %v1890 = vadd.f32 %v1721, %v1889
        %v1891 = vpop.f32.mrb[0].mxu0
        %1892 = vmatprep.mubr.bf16.mxu0 0
        %1893 = vmatmul.mubr.bf16.gmra.mrb[0].mxu0 %v1445
        %v1894 = vpop.f32.mrb[0].mxu0
        %v1895 = vpop.f32.mrb[0].mxu0
        %v1896 = vpop.f32.mrb[0].mxu0
        %v1897 = vadd.f32 %v1728, %v1896
        %v1898 = vpop.f32.mrb[0].mxu0
        %1899 = vmatprep.mubr.bf16.mxu0 0
        %1900 = vmatmul.mubr.bf16.gmra.mrb[0].mxu0 %v1446
        %v1901 = vpop.f32.mrb[0].mxu0
        %v1902 = vadd.f32 %v1733, %v1901
        %v1903 = vpop.f32.mrb[0].mxu0
        %v1904 = vpop.f32.mrb[0].mxu0
        %v1905 = vpop.f32.mrb[0].mxu0
        %1906 = vmatprep.mubr.bf16.mxu0 0
        %1907 = vmatmul.mubr.bf16.gmra.mrb[0].mxu0 %v1447
        %v1908 = vpop.f32.mrb[0].mxu0
        %v1909 = vadd.f32 %v1740, %v1908
        %v1910 = vpop.f32.mrb[0].mxu0
        %v1911 = vpop.f32.mrb[0].mxu0
        %v1912 = vadd.f32 %v1743, %v1911
        %v1913 = vpop.f32.mrb[0].mxu0
        %1914 = vmatprep.mubr.bf16.mxu0 0
        %1915 = vmatmul.mubr.bf16.gmra.mrb[0].mxu0 %v1448
        %v1916 = vpop.f32.mrb[0].mxu0
        %v1917 = vpop.f32.mrb[0].mxu0
        %v1918 = vpop.f32.mrb[0].mxu0
        %v1919 = vadd.f32 %v1750, %v1918
        %v1920 = vpop.f32.mrb[0].mxu0
        %1921 = vmatprep.mubr.bf16.mxu0 0
        %1922 = vmatmul.mubr.bf16.gmra.mrb[0].mxu0 %v1449
        %v1923 = vpop.f32.mrb[0].mxu0
        %v1924 = vadd.f32 %v1755, %v1923
        %v1925 = vpop.f32.mrb[0].mxu0
        %v1926 = vpop.f32.mrb[0].mxu0
        %v1927 = vpop.f32.mrb[0].mxu0
        %1928 = vdwg.mxu0
        %v1929 = vld [vmem:[#allocation2] sm:$0xfe]
        %s1930 = scalar_lea.vmem [#allocation8], 128
        %v1931 = vld [vmem:[%s1930] sm:$0xf]
        %v1932 = vld [vmem:[%s1930 + $0x4] sm:$0xf]
        %v1933 = vld [vmem:[%s1930 + $0x8] sm:$0xf]
        %v1934 = vld [vmem:[%s1930 + $0xc] sm:$0xf]
        %v1935 = vld [vmem:[%s1930 + $0x10] sm:$0xf]
        %v1936 = vld [vmem:[%s1930 + $0x14] sm:$0xf]
        %v1937 = vld [vmem:[%s1930 + $0x18] sm:$0xf]
        %v1938 = vld [vmem:[%s1930 + $0x1c] sm:$0xf]
        %v1939 = vld [vmem:[%s1930 + $0x20] sm:$0xf]
        %v1940 = vld [vmem:[%s1930 + $0x24] sm:$0xf]
        %v1941 = vld [vmem:[%s1930 + $0x28] sm:$0xf]
        %v1942 = vld [vmem:[%s1930 + $0x2c] sm:$0xf]
        %v1943 = vld [vmem:[%s1930 + $0x30] sm:$0xf]
        %v1944 = vld [vmem:[%s1930 + $0x34] sm:$0xf]
        %v1945 = vld [vmem:[%s1930 + $0x38] sm:$0xf]
        %v1946 = vld [vmem:[%s1930 + $0x3c] sm:$0xf]
        %v1959 = vrot.slane %v1929, 1
        %v1960 = vrot.slane %v1439, 1
        %v1961 = vsel %vm1027, %v1959, %v1960
        %v1962 = vrot.slane %v1440, 1
        %v1963 = vsel %vm1027, %v1960, %v1962
        %v1964 = vrot.slane %v1441, 1
        %v1965 = vsel %vm1027, %v1962, %v1964
        %v1966 = vrot.slane %v1442, 1
        %v1967 = vsel %vm1027, %v1964, %v1966
        %v1968 = vrot.slane %v1443, 1
        %v1969 = vsel %vm1027, %v1966, %v1968
        %v1970 = vrot.slane %v1444, 1
        %v1971 = vsel %vm1027, %v1968, %v1970
        %v1972 = vrot.slane %v1445, 1
        %v1973 = vsel %vm1027, %v1970, %v1972
        %v1974 = vrot.slane %v1446, 1
        %v1975 = vsel %vm1027, %v1972, %v1974
        %v1976 = vrot.slane %v1447, 1
        %v1977 = vsel %vm1027, %v1974, %v1976
        %v1978 = vrot.slane %v1448, 1
        %v1979 = vsel %vm1027, %v1976, %v1978
        %v1980 = vrot.slane %v1466, 1
        %v1981 = vsel %vm1027, %v1978, %v1980
        %v2010 = vunpack.c.l.b16 %v1931
        %v2011 = vunpack.c.l.b16 %v1932
        %v2012 = vunpack.c.l.b16 %v1933
        %v2013 = vunpack.c.l.b16 %v1934
        %v2014 = vunpack.c.l.b16 %v1935
        %v2015 = vunpack.c.l.b16 %v1936
        %v2016 = vunpack.c.l.b16 %v1937
        %v2017 = vunpack.c.l.b16 %v1938
        %v2018 = vunpack.c.l.b16 %v1939
        %v2019 = vunpack.c.l.b16 %v1940
        %v2020 = vunpack.c.l.b16 %v1941
        %v2021 = vunpack.c.l.b16 %v1942
        %v2022 = vunpack.c.l.b16 %v1943
        %v2023 = vunpack.c.l.b16 %v1944
        %v2024 = vunpack.c.l.b16 %v1945
        %v2025 = vunpack.c.l.b16 %v1946
        %v2026 = vpack.c.b16 %v2011, %v2010
        %v2027 = vpack.c.b16 %v2013, %v2012
        %v2028 = vpack.c.b16 %v2015, %v2014
        %v2029 = vpack.c.b16 %v2017, %v2016
        %v2030 = vpack.c.b16 %v2019, %v2018
        %v2031 = vpack.c.b16 %v2021, %v2020
        %v2032 = vpack.c.b16 %v2023, %v2022
        %v2033 = vpack.c.b16 %v2025, %v2024
        %2042 = vmatprep.subr.bf16.mxu0 0
        %2043 = vmatpush1.bf16.msra.mxu0 %v2026
        %2044 = vmatprep.subr.bf16.mxu0 0
        %2045 = vmatpush1.bf16.msra.mxu0 %v2027
        %2046 = vmatprep.subr.bf16.mxu0 0
        %2047 = vmatpush1.bf16.msra.mxu0 %v2028
        %2048 = vmatprep.subr.bf16.mxu0 0
        %2049 = vmatpush1.bf16.msra.mxu0 %v2029
        %2050 = vmatprep.subr.bf16.mxu0 0
        %2051 = vmatpush1.bf16.msra.mxu0 %v2030
        %2052 = vmatprep.subr.bf16.mxu0 0
        %2053 = vmatpush1.bf16.msra.mxu0 %v2031
        %2054 = vmatprep.subr.bf16.mxu0 0
        %2055 = vmatpush1.bf16.msra.mxu0 %v2032
        %2056 = vmatprep.subr.bf16.mxu0 0
        %2057 = vmatpush1.bf16.msra.mxu0 %v2033
        %2058 = vmatprep.subr.bf16.mxu0 0
        %2059 = vmatpush1.bf16.msra.mxu0 0
        %2060 = vmatprep.subr.bf16.mxu0 0
        %2061 = vmatpush1.bf16.msra.mxu0 0
        %2062 = vmatprep.subr.bf16.mxu0 0
        %2063 = vmatpush1.bf16.msra.mxu0 0
        %2064 = vmatprep.subr.bf16.mxu0 0
        %2065 = vmatpush1.bf16.msra.mxu0 0
        %2066 = vmatprep.subr.bf16.mxu0 0
        %2067 = vmatpush1.bf16.msra.mxu0 0
        %2068 = vmatprep.subr.bf16.mxu0 0
        %2069 = vmatpush1.bf16.msra.mxu0 0
        %2070 = vmatprep.subr.bf16.mxu0 0
        %2071 = vmatpush1.bf16.msra.mxu0 0
        %2072 = vmatprep.subr.bf16.mxu0 0
        %2073 = vmatpush1.bf16.msra.mxu0 0
        %2074 = vmatprep.mubr.bf16.mxu0 0
        %2075 = vmatmul.mubr.bf16.gmra.mrb[0].mxu0 %v1961
        %v2076 = vpop.f32.mrb[0].mxu0
        %v2077 = vadd.f32 0.0, %v2076
        %v2078 = vpop.f32.mrb[0].mxu0
        %v2079 = vpop.f32.mrb[0].mxu0
        %v2080 = vadd.f32 0.0, %v2079
        %v2081 = vpop.f32.mrb[0].mxu0
        %2082 = vmatprep.mubr.bf16.mxu0 0
        %2083 = vmatmul.mubr.bf16.gmra.mrb[0].mxu0 %v1963
        %v2084 = vpop.f32.mrb[0].mxu0
        %v2085 = vpop.f32.mrb[0].mxu0
        %v2086 = vpop.f32.mrb[0].mxu0
        %v2087 = vadd.f32 0.0, %v2086
        %v2088 = vpop.f32.mrb[0].mxu0
        %2089 = vmatprep.mubr.bf16.mxu0 0
        %2090 = vmatmul.mubr.bf16.gmra.mrb[0].mxu0 %v1965
        %v2091 = vpop.f32.mrb[0].mxu0
        %v2092 = vadd.f32 0.0, %v2091
        %v2093 = vpop.f32.mrb[0].mxu0
        %v2094 = vpop.f32.mrb[0].mxu0
        %v2095 = vpop.f32.mrb[0].mxu0
        %2096 = vmatprep.mubr.bf16.mxu0 0
        %2097 = vmatmul.mubr.bf16.gmra.mrb[0].mxu0 %v1967
        %v2098 = vpop.f32.mrb[0].mxu0
        %v2099 = vadd.f32 0.0, %v2098
        %v2100 = vpop.f32.mrb[0].mxu0
        %v2101 = vpop.f32.mrb[0].mxu0
        %v2102 = vadd.f32 0.0, %v2101
        %v2103 = vpop.f32.mrb[0].mxu0
        %2104 = vmatprep.mubr.bf16.mxu0 0
        %2105 = vmatmul.mubr.bf16.gmra.mrb[0].mxu0 %v1969
        %v2106 = vpop.f32.mrb[0].mxu0
        %v2107 = vpop.f32.mrb[0].mxu0
        %v2108 = vpop.f32.mrb[0].mxu0
        %v2109 = vadd.f32 0.0, %v2108
        %v2110 = vpop.f32.mrb[0].mxu0
        %2111 = vmatprep.mubr.bf16.mxu0 0
        %2112 = vmatmul.mubr.bf16.gmra.mrb[0].mxu0 %v1971
        %v2113 = vpop.f32.mrb[0].mxu0
        %v2114 = vadd.f32 0.0, %v2113
        %v2115 = vpop.f32.mrb[0].mxu0
        %v2116 = vpop.f32.mrb[0].mxu0
        %v2117 = vpop.f32.mrb[0].mxu0
        %2118 = vmatprep.mubr.bf16.mxu0 0
        %2119 = vmatmul.mubr.bf16.gmra.mrb[0].mxu0 %v1973
        %v2120 = vpop.f32.mrb[0].mxu0
        %v2121 = vadd.f32 0.0, %v2120
        %v2122 = vpop.f32.mrb[0].mxu0
        %v2123 = vpop.f32.mrb[0].mxu0
        %v2124 = vadd.f32 0.0, %v2123
        %v2125 = vpop.f32.mrb[0].mxu0
        %2126 = vmatprep.mubr.bf16.mxu0 0
        %2127 = vmatmul.mubr.bf16.gmra.mrb[0].mxu0 %v1975
        %v2128 = vpop.f32.mrb[0].mxu0
        %v2129 = vpop.f32.mrb[0].mxu0
        %v2130 = vpop.f32.mrb[0].mxu0
        %v2131 = vadd.f32 0.0, %v2130
        %v2132 = vpop.f32.mrb[0].mxu0
        %2133 = vmatprep.mubr.bf16.mxu0 0
        %2134 = vmatmul.mubr.bf16.gmra.mrb[0].mxu0 %v1977
        %v2135 = vpop.f32.mrb[0].mxu0
        %v2136 = vadd.f32 0.0, %v2135
        %v2137 = vpop.f32.mrb[0].mxu0
        %v2138 = vpop.f32.mrb[0].mxu0
        %v2139 = vpop.f32.mrb[0].mxu0
        %2140 = vmatprep.mubr.bf16.mxu0 0
        %2141 = vmatmul.mubr.bf16.gmra.mrb[0].mxu0 %v1979
        %v2142 = vpop.f32.mrb[0].mxu0
        %v2143 = vadd.f32 0.0, %v2142
        %v2144 = vpop.f32.mrb[0].mxu0
        %v2145 = vpop.f32.mrb[0].mxu0
        %v2146 = vadd.f32 0.0, %v2145
        %v2147 = vpop.f32.mrb[0].mxu0
        %2148 = vmatprep.mubr.bf16.mxu0 0
        %2149 = vmatmul.mubr.bf16.gmra.mrb[0].mxu0 %v1981
        %v2150 = vpop.f32.mrb[0].mxu0
        %v2151 = vpop.f32.mrb[0].mxu0
        %v2152 = vpop.f32.mrb[0].mxu0
        %v2153 = vadd.f32 0.0, %v2152
        %v2154 = vpop.f32.mrb[0].mxu0
        %2155 = vmatprep.mubr.bf16.mxu0 0
        %2156 = vmatmul.mubr.bf16.gmra.mrb[0].mxu0 %v1980
        %v2157 = vpop.f32.mrb[0].mxu0
        %v2158 = vadd.f32 0.0, %v2157
        %v2159 = vpop.f32.mrb[0].mxu0
        %v2160 = vpop.f32.mrb[0].mxu0
        %v2161 = vpop.f32.mrb[0].mxu0
        %2162 = vdwg.mxu0
        %v2163 = vadd.f32 %v1843, %v2077
        %v2164 = vadd.f32 %v1846, %v2080
        %v2165 = vadd.f32 %v1853, %v2087
        %v2166 = vadd.f32 %v1858, %v2092
        %v2167 = vadd.f32 %v1865, %v2099
        %v2168 = vadd.f32 %v1868, %v2102
        %v2169 = vadd.f32 %v1875, %v2109
        %v2170 = vadd.f32 %v1880, %v2114
        %v2171 = vadd.f32 %v1887, %v2121
        %v2172 = vadd.f32 %v1890, %v2124
        %v2173 = vadd.f32 %v1897, %v2131
        %v2174 = vadd.f32 %v1902, %v2136
        %v2175 = vadd.f32 %v1909, %v2143
        %v2176 = vadd.f32 %v1912, %v2146
        %v2177 = vadd.f32 %v1919, %v2153
        %v2178 = vadd.f32 %v1924, %v2158
        %v2179 = vld [vmem:[%s5] sm:$0x1]
        %v2181 = vlaneseq
        %v2182 = vshrl.u32 %v2181, 7
        %v2183 = vsub.s32 0, %v2182
        %v2184 = vrot.slane %v2179, %v2183
        %v2186 = vmul.f32 %v2163, %v2184
        %v2187 = vmul.f32 %v2164, %v2184
        %v2188 = vmul.f32 %v2165, %v2184
        %v2189 = vmul.f32 %v2166, %v2184
        %v2190 = vmul.f32 %v2167, %v2184
        %v2191 = vmul.f32 %v2168, %v2184
        %v2192 = vmul.f32 %v2169, %v2184
        %v2193 = vmul.f32 %v2170, %v2184
        %v2194 = vmul.f32 %v2171, %v2184
        %v2195 = vmul.f32 %v2172, %v2184
        %v2196 = vmul.f32 %v2173, %v2184
        %v2197 = vmul.f32 %v2174, %v2184
        %v2198 = vmul.f32 %v2175, %v2184
        %v2199 = vmul.f32 %v2176, %v2184
        %v2200 = vmul.f32 %v2177, %v2184
        %v2201 = vmul.f32 %v2178, %v2184
        %v2202 = vld [vmem:[%s6] sm:$0x1]
        %v2204 = vlaneseq
        %v2205 = vshrl.u32 %v2204, 7
        %v2206 = vsub.s32 0, %v2205
        %v2207 = vrot.slane %v2202, %v2206
        %v2209 = vadd.f32 %v2186, %v2207
        %v2210 = vadd.f32 %v2187, %v2207
        %v2211 = vadd.f32 %v2188, %v2207
        %v2212 = vadd.f32 %v2189, %v2207
        %v2213 = vadd.f32 %v2190, %v2207
        %v2214 = vadd.f32 %v2191, %v2207
        %v2215 = vadd.f32 %v2192, %v2207
        %v2216 = vadd.f32 %v2193, %v2207
        %v2217 = vadd.f32 %v2194, %v2207
        %v2218 = vadd.f32 %v2195, %v2207
        %v2219 = vadd.f32 %v2196, %v2207
        %v2220 = vadd.f32 %v2197, %v2207
        %v2221 = vadd.f32 %v2198, %v2207
        %v2222 = vadd.f32 %v2199, %v2207
        %v2223 = vadd.f32 %v2200, %v2207
        %v2224 = vadd.f32 %v2201, %v2207
        %v2225 = vld [vmem:[%s288] sm:$0xff]
        %v2226 = vld [vmem:[%s288 + $0x8] sm:$0xff]
        %v2227 = vadd.f32 %v2209, %v2225
        %v2228 = vadd.f32 %v2210, %v2226
        %v2229 = vmax.f32 %v2227, 0.0
        %v2230 = vmax.f32 %v2228, 0.0
        %2231 = vst [vmem:[%s326] sm:$0xff] %v2229
        %2232 = vst [vmem:[%s326 + $0x8] sm:$0xff] %v2230
        %v2233 = vld [vmem:[%s366] sm:$0xff]
        %v2234 = vld [vmem:[%s366 + $0x8] sm:$0xff]
        %v2235 = vadd.f32 %v2211, %v2233
        %v2236 = vadd.f32 %v2212, %v2234
        %v2237 = vmax.f32 %v2235, 0.0
        %v2238 = vmax.f32 %v2236, 0.0
        %s2239 = scalar_lea.vmem %s326, 16 [#allocation9]
        %2240 = vst [vmem:[%s2239] sm:$0xff] %v2237
        %2241 = vst [vmem:[%s2239 + $0x8] sm:$0xff] %v2238
        %v2242 = vld [vmem:[%s391] sm:$0xff]
        %v2243 = vld [vmem:[%s391 + $0x8] sm:$0xff]
        %v2244 = vadd.f32 %v2213, %v2242
        %v2245 = vadd.f32 %v2214, %v2243
        %v2246 = vmax.f32 %v2244, 0.0
        %v2247 = vmax.f32 %v2245, 0.0
        %s2248 = scalar_lea.vmem %s326, 32 [#allocation9]
        %2249 = vst [vmem:[%s2248] sm:$0xff] %v2246
        %2250 = vst [vmem:[%s2248 + $0x8] sm:$0xff] %v2247
        %v2251 = vld [vmem:[%s410] sm:$0xff]
        %v2252 = vld [vmem:[%s410 + $0x8] sm:$0xff]
        %v2253 = vadd.f32 %v2215, %v2251
        %v2254 = vadd.f32 %v2216, %v2252
        %v2255 = vmax.f32 %v2253, 0.0
        %v2256 = vmax.f32 %v2254, 0.0
        %s2257 = scalar_lea.vmem %s326, 48 [#allocation9]
        %2258 = vst [vmem:[%s2257] sm:$0xff] %v2255
        %2259 = vst [vmem:[%s2257 + $0x8] sm:$0xff] %v2256
        %v2260 = vld [vmem:[%s429] sm:$0xff]
        %v2261 = vld [vmem:[%s429 + $0x8] sm:$0xff]
        %v2262 = vadd.f32 %v2217, %v2260
        %v2263 = vadd.f32 %v2218, %v2261
        %v2264 = vmax.f32 %v2262, 0.0
        %v2265 = vmax.f32 %v2263, 0.0
        %s2266 = scalar_lea.vmem %s326, 64 [#allocation9]
        %2267 = vst [vmem:[%s2266] sm:$0xff] %v2264
        %2268 = vst [vmem:[%s2266 + $0x8] sm:$0xff] %v2265
        %v2269 = vld [vmem:[%s448] sm:$0xff]
        %v2270 = vld [vmem:[%s448 + $0x8] sm:$0xff]
        %v2271 = vadd.f32 %v2219, %v2269
        %v2272 = vadd.f32 %v2220, %v2270
        %v2273 = vmax.f32 %v2271, 0.0
        %v2274 = vmax.f32 %v2272, 0.0
        %s2275 = scalar_lea.vmem %s326, 80 [#allocation9]
        %2276 = vst [vmem:[%s2275] sm:$0xff] %v2273
        %2277 = vst [vmem:[%s2275 + $0x8] sm:$0xff] %v2274
        %v2278 = vld [vmem:[%s467] sm:$0xff]
        %v2279 = vld [vmem:[%s467 + $0x8] sm:$0xff]
        %v2280 = vadd.f32 %v2221, %v2278
        %v2281 = vadd.f32 %v2222, %v2279
        %v2282 = vmax.f32 %v2280, 0.0
        %v2283 = vmax.f32 %v2281, 0.0
        %s2284 = scalar_lea.vmem %s326, 96 [#allocation9]
        %2285 = vst [vmem:[%s2284] sm:$0xff] %v2282
        %2286 = vst [vmem:[%s2284 + $0x8] sm:$0xff] %v2283
        %v2287 = vld [vmem:[%s486] sm:$0xff]
        %v2288 = vld [vmem:[%s486 + $0x8] sm:$0xff]
        %v2289 = vadd.f32 %v2223, %v2287
        %v2290 = vadd.f32 %v2224, %v2288
        %v2291 = vmax.f32 %v2289, 0.0
        %v2292 = vmax.f32 %v2290, 0.0
        %s2293 = scalar_lea.vmem %s326, 112 [#allocation9]
        %2294 = vst [vmem:[%s2293] sm:$0xff] %v2291
        %2295 = vst [vmem:[%s2293 + $0x8] sm:$0xff] %v2292
        %s2296 = sand.u32 %s185, 1
        %s2297 = scalar_lea.sflag [#allocation5], %s2296
        %s2298 = sand.u32 %s185, 1
        %s2299 = smul.addr %s2298, 128
        %s2300 = scalar_lea.vmem [#allocation9], %s2299
        // Predicated region
        $region61: #{tpu_custom_call.1} parent=47 // pred_check
          %p2301 = pneg %p195
        $region62: #{tpu_custom_call.1} parent=47 // pred_check_branch
          %2303 = sbr.rel (%p2301) target = $region64
        $region63: #{tpu_custom_call.1} parent=47 // pred_region
          %s2304 = smul.u32 8, %s25
          %s2306 = ssub.s32 2048, 2048
          %2307 = vsyncadd %s2297, %s2306
          %s2308 = smul.addr %s2304, 2
          %s2309 = smul.addr %s2308, 128
          %s2310 = scalar_lea.hbm %s7, %s2309
          %s2311 = sshll.u32 %s2300, 4
          %s2312 = int_to_ptr.vmem [resolvable:$true] %s2311
          %2317 = dma.vmem_to_hbm [thread:$0]  %s2312, 2048, %s2310, %s2297, 128, 128, 8
        $region64: #{tpu_custom_call.1} parent=47 // pred_fallthru
          _
      $region48: #{tpu_custom_call.1} parent=5 // pred_fallthru
        _
      %p2318 = scmp.le.s32.totalorder 2, %s20
      // Predicated region
      $region65: #{tpu_custom_call.1} parent=5 // pred_check
        %p2319 = pneg %p2318
      $region66: #{tpu_custom_call.1} parent=5 // pred_check_branch
        %2321 = sbr.rel (%p2319) target = $region68
      $region67: #{tpu_custom_call.1} parent=5 // pred_region
        %s2322 = ssub.s32 %s20, 2
        // Predicated region
        $region69: #{tpu_custom_call.1} parent=67 // pred_check
          %p2323 = pneg %p201
        $region70: #{tpu_custom_call.1} parent=67 // pred_check_branch
          %2325 = sbr.rel (%p2323) target = $region72
        $region71: #{tpu_custom_call.1} parent=67 // pred_region
          %s2326 = sand.u32 %s186, 1
          %s2327 = scalar_lea.sflag [#allocation5], %s2326
          %s2328 = sand.u32 %s186, 1
          %s2329 = smul.addr %s2328, 128
          %s2330 = scalar_lea.vmem [#allocation9], %s2329
          %2331 = dma.done %s2327, 2048
        $region72: #{tpu_custom_call.1} parent=67 // pred_fallthru
          _
      $region68: #{tpu_custom_call.1} parent=5 // pred_fallthru
        _
    $region6: #{tpu_custom_call.1} parent=1 // loop_footer
      %s24 = sadd.s32 1, %s20
    $region7: #{tpu_custom_call.1} parent=1 // loop_footer_branch
      %19 = sbr.rel target = $region3
    $region8: #{tpu_custom_call.1} parent=1 // loop_exit
      _
    %2332 = vsyncpa [#allocation4], 1
    %s2333 = scalar_lea.sflag [#allocation4], 1
    %2334 = vsyncpa %s2333, 1
    %2335 = vsyncpa [#allocation7], 1
    %2336 = vsyncpa [#allocation5], 1
    %s2337 = scalar_lea.sflag [#allocation5], 1
    %2338 = vsyncpa %s2337, 1

</llo_original>
